<compile_context>
chip_gen: v7x
topology: tpu7x:2x2x1
jax: 0.10.0
libtpu: 0.0.40
codegen_flags: <defaults>
</compile_context>

<pallas_src>
from functools import partial

import numpy as np
import jax
import jax.numpy as jnp
from jax import lax
from jax.experimental import pallas as pl
from jax.experimental.pallas import tpu as pltpu

_VMEM_LIMIT = 32 * 1024 * 1024     # safe explicit scoped-VMEM limit on v5e/v6e/v7x
_LANE_TILE = 128                   # lane granularity of the feature axis
_MAX_TD = 512                      # feature-tile cap (MXU width on v6e/v7x)


# ---------------------------------------------------------------------------
# Pallas kernel: fused double-centering + Gram for one lower-triangle tile pair
# ---------------------------------------------------------------------------
def _dcorr_gram_kernel(it_ref, jt_ref, ei_ref, ej_ref, m_ref, *, batch):
    """m[fi, fj] = mean_{a,b} Atilde_i[a,b] * Atilde_j[a,b] for one (i,j) tile.

    it_ref / jt_ref are the scalar-prefetched tile tables (used only by the
    index_maps); ei_ref / ej_ref are the (B, TD) feature slices.
    """
    inv_b = jnp.float32(1.0 / batch)
    inv_bb = jnp.float32(1.0 / (batch * batch))

    def centered_slab(e_ref):
        e = e_ref[...]                                           # (B, TD) f32
        # a3[b, a, i] = |x[a, i] - x[b, i]|
        a3 = jnp.abs(e[None, :, :] - e[:, None, :])              # (B, B, TD)
        r = jnp.sum(a3, axis=0) * inv_b                          # row means (B, TD)
        # fold the "+ g" grand-mean term into r once (hoisted VPU work):
        rc = r - 0.5 * (jnp.sum(r, axis=0, keepdims=True) * inv_b)
        c3 = a3 - rc[None, :, :] - rc[:, None, :]                # double-centered
        td = e.shape[-1]
        # stack all B*B (a, b) pairs -> one deep-K matmul operand; bf16 for MXU
        return c3.reshape(batch * batch, td).astype(jnp.bfloat16)

    ci = centered_slab(ei_ref)                                   # (B*B, TDI)
    cj = centered_slab(ej_ref)                                   # (B*B, TDJ)
    # single MXU matmul, contraction depth K = B*B, f32 accumulation
    m = lax.dot_general(ci, cj,
                        dimension_numbers=(((0,), (0,)), ((), ())),
                        preferred_element_type=jnp.float32)      # (TDI, TDJ)
    m_ref[...] = m * inv_bb


# ---------------------------------------------------------------------------
# Forward-pass wrapper
# ---------------------------------------------------------------------------
def _d_tiling(D, B):
    """Feature tile width TD and padded feature count Dp (multiple of TD)."""
    # Cap TD so the two stacked (B*B, TD) f32 slabs (plus bf16 copies and the
    # (B, B, TD) intermediates) stay well inside the scoped-VMEM budget.
    slab_budget = 8 * 1024 * 1024                    # bytes per f32 slab
    cap = max(_LANE_TILE,
              (slab_budget // (4 * B * B)) // _LANE_TILE * _LANE_TILE)
    td_max = min(_MAX_TD, cap)
    # TODO(synk): for very large batch (B^2 * 128 * 4 bytes > ~8 MiB, i.e.
    # B >~ 180) a chunked-K accumulator path would be needed; not implemented.
    if D <= td_max:
        return D, D                                   # single full-width tile
    TD = td_max
    Dp = ((D + TD - 1) // TD) * TD
    return Dp, TD


def distance_correlation_loss(embeddings, triplets, margin):
    """Returns (triplet_loss + corr_loss, num_triplets)."""
    B, D = embeddings.shape
    emb = embeddings.astype(jnp.float32)

    # --------------------------------------------------------- triplet term
    # Tiny B x B problem -> plain XLA (per perf review; a Pallas kernel here is
    # pure launch overhead).
    sq_norms = jnp.sum(emb * emb, axis=1)
    sqd = sq_norms[:, None] + sq_norms[None, :] - 2.0 * jnp.dot(emb, emb.T)
    sqd = jnp.maximum(sqd, 0.0)                       # guard cancellation
    d_ap = sqd[triplets[:, 0], triplets[:, 1]]
    d_an = sqd[triplets[:, 0], triplets[:, 2]]
    triplet_loss = jnp.mean(jnp.maximum(d_ap - d_an + jnp.float32(margin), 0.0))

    # ------------------------------------------- distance-correlation term
    Dp, TD = _d_tiling(D, B)
    emb_p = emb if Dp == D else jnp.pad(emb, ((0, 0), (0, Dp - D)))
    nd = Dp // TD

    # flat enumeration of only the lower-triangle (incl. diagonal) tile pairs
    ti, tj = np.tril_indices(nd)                      # i_tile >= j_tile
    ntri = len(ti)
    it_tab = jnp.asarray(ti, dtype=jnp.int32)
    jt_tab = jnp.asarray(tj, dtype=jnp.int32)

    gram_tiles = pl.pallas_call(
        partial(_dcorr_gram_kernel, batch=B),
        out_shape=jax.ShapeDtypeStruct((ntri, TD, TD), jnp.float32),
        grid_spec=pltpu.PrefetchScalarGridSpec(
            num_scalar_prefetch=2,
            grid=(ntri,),
            in_specs=[
                pl.BlockSpec((B, TD), lambda t, it, jt: (0, it[t])),
                pl.BlockSpec((B, TD), lambda t, it, jt: (0, jt[t])),
            ],
            out_specs=pl.BlockSpec((None, TD, TD), lambda t, it, jt: (t, 0, 0)),
        ),
        compiler_params=pltpu.CompilerParams(
            dimension_semantics=("parallel",),
            vmem_limit_bytes=_VMEM_LIMIT),
    )(it_tab, jt_tab, emb_p, emb_p)

    # scatter the packed lower-triangle tiles back into a (Dp, Dp) matrix
    # (tiny, static loop; upper triangle stays zero and is never read)
    gram_p = jnp.zeros((Dp, Dp), jnp.float32)
    for t in range(ntri):
        i0, j0 = int(ti[t]) * TD, int(tj[t]) * TD
        gram_p = gram_p.at[i0:i0 + TD, j0:j0 + TD].set(gram_tiles[t])

    gram = jnp.maximum(gram_p[:D, :D], 0.0)           # V-stat >= 0; fp guard
    dvar = jnp.sqrt(jnp.diag(gram))
    dcov = jnp.sqrt(gram)
    # TODO(synk): constant (zero-variance) features give NaN in the PyTorch
    # reference; the tiny denominator floor maps those dcorr entries to 0 here.
    denom = jnp.sqrt(jnp.maximum(dvar[:, None] * dvar[None, :], 1e-30))
    dcorr = dcov / denom
    tri_mask = jnp.tril(jnp.ones((D, D), jnp.float32), k=-1)
    corr_loss = jnp.sum(dcorr * tri_mask) / jnp.float32(D * (D - 1) // 2)

    # TODO(synk): the PyTorch module also writes (corr_loss, triplet_loss) to a
    # log file; file I/O is intentionally omitted.
    return triplet_loss + corr_loss, int(triplets.shape[0])


# ---------------------------------------------------------------------------
# Deterministic triplet selector + pure-numpy reference for validation
# ---------------------------------------------------------------------------
# TODO(synk): triplet_selector is an injected dependency in the PyTorch module;
# here we use a deterministic "all valid triplets" selector built from labels.
def all_triplets(target_np):
    trips = []
    n = len(target_np)
    for a in range(n):
        for p in range(n):
            if p == a or target_np[p] != target_np[a]:
                continue
            for q in range(n):
                if target_np[q] == target_np[a]:
                    continue
                trips.append((a, p, q))
    return np.asarray(trips, dtype=np.int32)


def _ref_forward(emb_np, trips_np, margin):
    emb = emb_np.astype(np.float64)
    piv, pos, neg = emb[trips_np[:, 0]], emb[trips_np[:, 1]], emb[trips_np[:, 2]]
    ap = ((piv - pos) ** 2).sum(1)
    an = ((piv - neg) ** 2).sum(1)
    tl = np.maximum(ap - an + margin, 0.0).mean()

    B, D = emb.shape
    A = np.abs(emb[:, None, :] - emb[None, :, :])              # (B, B, D)
    m = A.mean(axis=0, keepdims=True)                          # (1, B, D)
    Ac = A - m - np.transpose(m, (1, 0, 2)) + m.mean(axis=1, keepdims=True)
    gram = np.einsum('abi,abj->ij', Ac, Ac) / (B * B)          # (D, D)
    dvar = np.sqrt(np.diag(gram))
    dcorr = np.sqrt(np.maximum(gram, 0.0)) / np.sqrt(dvar[:, None] * dvar[None, :])
    ii, jj = np.tril_indices(D, k=-1)
    return tl + dcorr[ii, jj].mean(), len(trips_np)


# ---------------------------------------------------------------------------
if __name__ == "__main__":
    key = jax.random.PRNGKey(0)
    B, D = 16, 256                 # batch size, embedding dim
    margin = 1.0

    embeddings = jax.random.normal(key, (B, D), dtype=jnp.float32)
    target = np.array([0] * (B // 2) + [1] * (B - B // 2), dtype=np.int32)
    triplets = jnp.asarray(all_triplets(target))

    loss, n_triplets = distance_correlation_loss(embeddings, triplets, margin)
    loss = jax.block_until_ready(loss)

    ref_loss, ref_n = _ref_forward(np.asarray(embeddings), np.asarray(triplets), margin)
    assert n_triplets == ref_n
    np.testing.assert_allclose(float(loss), ref_loss, rtol=2e-2, atol=2e-2)

    print("KERNEL_OK")
</pallas_src>

<mosaic_0001>
module attributes {stable_mosaic.version = 11 : i64} {
  func.func @_dcorr_gram_kernel(%arg0: i32, %arg1: memref<1xi32, #tpu.memory_space<smem>>, %arg2: memref<1xi32, #tpu.memory_space<smem>>, %arg3: memref<16x256xf32, #tpu.memory_space<vmem>>, %arg4: memref<16x256xf32, #tpu.memory_space<vmem>>, %arg5: memref<1x256x256xf32, #tpu.memory_space<vmem>>) attributes {dimension_semantics = [#tpu.dimension_semantics<parallel>], iteration_bounds = array<i64: 1>, scalar_prefetch = 2 : i64, scratch_operands = 0 : i64, tpu.core_type = #tpu.core_type<tc>, window_params = [{transform_indices = @transform_0, window_bounds = array<i64: 16, 256>}, {transform_indices = @transform_1, window_bounds = array<i64: 16, 256>}, {transform_indices = @transform_2, window_bounds = array<i64: 1, 256, 256>}]} {
    %c0 = arith.constant 0 : index
    %c0_0 = arith.constant 0 : index
    %0 = vector.load %arg3[%c0, %c0_0] : memref<16x256xf32, #tpu.memory_space<vmem>>, vector<16x256xf32>
    %1 = vector.shape_cast %0 : vector<16x256xf32> to vector<1x16x256xf32>
    %2 = vector.shape_cast %0 : vector<16x256xf32> to vector<16x1x256xf32>
    %3 = vector.broadcast %1 : vector<1x16x256xf32> to vector<16x16x256xf32>
    %4 = vector.broadcast %2 : vector<16x1x256xf32> to vector<16x16x256xf32>
    %5 = arith.subf %3, %4 : vector<16x16x256xf32>
    %6 = math.absf %5 : vector<16x16x256xf32>
    %cst = arith.constant dense<0.000000e+00> : vector<16x256xf32>
    %7 = vector.multi_reduction <add>, %6, %cst [0] : vector<16x16x256xf32> to vector<16x256xf32>
    %cst_1 = arith.constant 6.250000e-02 : f32
    %8 = vector.broadcast %cst_1 : f32 to vector<16x256xf32>
    %9 = arith.mulf %7, %8 : vector<16x256xf32>
    %cst_2 = arith.constant dense<0.000000e+00> : vector<256xf32>
    %10 = vector.multi_reduction <add>, %9, %cst_2 [0] : vector<16x256xf32> to vector<256xf32>
    %11 = vector.shape_cast %10 : vector<256xf32> to vector<1x256xf32>
    %cst_3 = arith.constant 6.250000e-02 : f32
    %12 = vector.broadcast %cst_3 : f32 to vector<1x256xf32>
    %13 = arith.mulf %11, %12 : vector<1x256xf32>
    %cst_4 = arith.constant 5.000000e-01 : f32
    %14 = vector.broadcast %cst_4 : f32 to vector<1x256xf32>
    %15 = arith.mulf %14, %13 : vector<1x256xf32>
    %16 = vector.broadcast %15 : vector<1x256xf32> to vector<16x256xf32>
    %17 = arith.subf %9, %16 : vector<16x256xf32>
    %18 = vector.shape_cast %17 : vector<16x256xf32> to vector<1x16x256xf32>
    %19 = vector.broadcast %18 : vector<1x16x256xf32> to vector<16x16x256xf32>
    %20 = arith.subf %6, %19 : vector<16x16x256xf32>
    %21 = vector.shape_cast %17 : vector<16x256xf32> to vector<16x1x256xf32>
    %22 = vector.broadcast %21 : vector<16x1x256xf32> to vector<16x16x256xf32>
    %23 = arith.subf %20, %22 : vector<16x16x256xf32>
    %24 = vector.shape_cast %23 : vector<16x16x256xf32> to vector<256x256xf32>
    %25 = arith.truncf %24 : vector<256x256xf32> to vector<256x256xbf16>
    %c0_5 = arith.constant 0 : index
    %c0_6 = arith.constant 0 : index
    %26 = vector.load %arg4[%c0_5, %c0_6] : memref<16x256xf32, #tpu.memory_space<vmem>>, vector<16x256xf32>
    %27 = vector.shape_cast %26 : vector<16x256xf32> to vector<1x16x256xf32>
    %28 = vector.shape_cast %26 : vector<16x256xf32> to vector<16x1x256xf32>
    %29 = vector.broadcast %27 : vector<1x16x256xf32> to vector<16x16x256xf32>
    %30 = vector.broadcast %28 : vector<16x1x256xf32> to vector<16x16x256xf32>
    %31 = arith.subf %29, %30 : vector<16x16x256xf32>
    %32 = math.absf %31 : vector<16x16x256xf32>
    %cst_7 = arith.constant dense<0.000000e+00> : vector<16x256xf32>
    %33 = vector.multi_reduction <add>, %32, %cst_7 [0] : vector<16x16x256xf32> to vector<16x256xf32>
    %cst_8 = arith.constant 6.250000e-02 : f32
    %34 = vector.broadcast %cst_8 : f32 to vector<16x256xf32>
    %35 = arith.mulf %33, %34 : vector<16x256xf32>
    %cst_9 = arith.constant dense<0.000000e+00> : vector<256xf32>
    %36 = vector.multi_reduction <add>, %35, %cst_9 [0] : vector<16x256xf32> to vector<256xf32>
    %37 = vector.shape_cast %36 : vector<256xf32> to vector<1x256xf32>
    %cst_10 = arith.constant 6.250000e-02 : f32
    %38 = vector.broadcast %cst_10 : f32 to vector<1x256xf32>
    %39 = arith.mulf %37, %38 : vector<1x256xf32>
    %cst_11 = arith.constant 5.000000e-01 : f32
    %40 = vector.broadcast %cst_11 : f32 to vector<1x256xf32>
    %41 = arith.mulf %40, %39 : vector<1x256xf32>
    %42 = vector.broadcast %41 : vector<1x256xf32> to vector<16x256xf32>
    %43 = arith.subf %35, %42 : vector<16x256xf32>
    %44 = vector.shape_cast %43 : vector<16x256xf32> to vector<1x16x256xf32>
    %45 = vector.broadcast %44 : vector<1x16x256xf32> to vector<16x16x256xf32>
    %46 = arith.subf %32, %45 : vector<16x16x256xf32>
    %47 = vector.shape_cast %43 : vector<16x256xf32> to vector<16x1x256xf32>
    %48 = vector.broadcast %47 : vector<16x1x256xf32> to vector<16x16x256xf32>
    %49 = arith.subf %46, %48 : vector<16x16x256xf32>
    %50 = vector.shape_cast %49 : vector<16x16x256xf32> to vector<256x256xf32>
    %51 = arith.truncf %50 : vector<256x256xf32> to vector<256x256xbf16>
    %cst_12 = arith.constant dense<0.000000e+00> : vector<256x256xf32>
    %52 = tpu.matmul %25, %51, %cst_12 {dimension_numbers = #tpu.dot_dimension_numbers<[0], [0], [1], [1], [0, 1, 1, 1], [], []>} : vector<256x256xbf16>, vector<256x256xbf16>, vector<256x256xf32> -> vector<256x256xf32>
    %cst_13 = arith.constant 3.906250e-03 : f32
    %53 = vector.broadcast %cst_13 : f32 to vector<256x256xf32>
    %54 = arith.mulf %52, %53 : vector<256x256xf32>
    %c0_14 = arith.constant 0 : index
    %c0_15 = arith.constant 0 : index
    %c0_16 = arith.constant 0 : index
    %55 = vector.load %arg5[%c0_14, %c0_15, %c0_16] : memref<1x256x256xf32, #tpu.memory_space<vmem>>, vector<1x256x256xf32>
    %56 = vector.shape_cast %55 : vector<1x256x256xf32> to vector<256x256xf32>
    %57 = vector.shape_cast %54 : vector<256x256xf32> to vector<1x256x256xf32>
    tpu.vector_store %arg5[%c0_14, %c0_15, %c0_16], %57 {strides = array<i32>} : memref<1x256x256xf32, #tpu.memory_space<vmem>>, vector<1x256x256xf32>,
    return
  }
  func.func @transform_0(%arg0: i32, %arg1: memref<1xi32, #tpu.memory_space<smem>>, %arg2: memref<1xi32, #tpu.memory_space<smem>>) -> (i32, i32) {
    %0 = arith.index_cast %arg0 : i32 to index
    %1 = memref.load %arg1[%0] : memref<1xi32, #tpu.memory_space<smem>>
    %c0_i32 = arith.constant 0 : i32
    %c0_i32_0 = arith.constant 0 : i32
    return %c0_i32, %1 : i32, i32
  }
  func.func @transform_1(%arg0: i32, %arg1: memref<1xi32, #tpu.memory_space<smem>>, %arg2: memref<1xi32, #tpu.memory_space<smem>>) -> (i32, i32) {
    %0 = arith.index_cast %arg0 : i32 to index
    %1 = memref.load %arg2[%0] : memref<1xi32, #tpu.memory_space<smem>>
    %c0_i32 = arith.constant 0 : i32
    %c0_i32_0 = arith.constant 0 : i32
    return %c0_i32, %1 : i32, i32
  }
  func.func @transform_2(%arg0: i32, %arg1: memref<1xi32, #tpu.memory_space<smem>>, %arg2: memref<1xi32, #tpu.memory_space<smem>>) -> (i32, i32, i32) {
    %c0_i32 = arith.constant 0 : i32
    %c0_i32_0 = arith.constant 0 : i32
    %c0_i32_1 = arith.constant 0 : i32
    return %arg0, %c0_i32, %c0_i32_0 : i32, i32, i32
  }
}

</mosaic_0001>

<llo_original>
// kernel: tpu_custom_call.1
$region0: #{tpu_custom_call.1}
  #allocation0 [shape = 'u32[]', space=smem, size = 0x4, offset = 0x4, fixed_abs, tag = 'smem constant byte address 0x4 - core index']
  #allocation1 [shape = 'u32[144,128]{1,0:T(1,128)}', space=vmem, size = 0x12000, scoped, tag = 'internal scratch']
  #allocation2 [shape = 's32[1]{0}', space=sflag, size = 0x4, scoped, tag = 'scoped memory for tpu_custom_call.1']
  #allocation3 [shape = 's32[1]{0:T(128)S(6)}', space=smem, size = 0x200, scoped, tag = 'prefetched SMEM operand 0']
  #allocation4 [shape = 's32[1]{0:T(128)S(6)}', space=smem, size = 0x200, scoped, tag = 'prefetched SMEM operand 1']
  %s0 = inlined_call_operand.<no memory space> [shape: s32[1], index: 0, kind: input, shape index: {}]
  %s1 = inlined_call_operand.<no memory space> [shape: s32[1], index: 1, kind: input, shape index: {}]
  %s2 = inlined_call_operand.hbm [shape: f32[16,256], index: 2, kind: input, shape index: {}]
  %s3 = inlined_call_operand.hbm [shape: f32[16,256], index: 3, kind: input, shape index: {}]
  %s4 = inlined_call_operand.hbm [shape: f32[1,256,256], index: 4, kind: output, shape index: {}]
  %s5 = sld [smem:[#allocation0]]
  $region26: #{tpu_custom_call.1} parent=0
    _
  %s7 = ssub.s32 1, %s5
  %s8 = scalar_select 0, %s7, %s5
  %9 = sst [smem:[#allocation3]] %s0
  %10 = sst [smem:[#allocation4]] %s1
  $region1: #{tpu_custom_call.1} parent=0
    #allocation5 [shape = 'u8[16384]{0}', space=vmem, size = 0x4000, scoped, tag = 'input window, operand 2, single buffered']
    #allocation6 [shape = 's32[1]{0}', space=sflag, size = 0x4, scoped, tag = 'scoped memory for tpu_custom_call.1']
    #allocation7 [shape = 's32[1]{0}', space=sflag, size = 0x4, scoped, tag = 'scoped memory for tpu_custom_call.1']
    #allocation8 [shape = 'u8[16384]{0}', space=vmem, size = 0x4000, scoped, tag = 'input window, operand 3, single buffered']
    #allocation9 [shape = 's32[1]{0}', space=sflag, size = 0x4, scoped, tag = 'scoped memory for tpu_custom_call.1']
    #allocation10 [shape = 'u8[262144]{0}', space=vmem, size = 0x40000, scoped, tag = 'output window, operand 0, single buffered']
    %11 = vsyncpa [#allocation6], 0
    %12 = vsyncpa [#allocation9], 0
    %13 = vsyncpa [#allocation7], 0
    // Predicated region
    $region2: #{tpu_custom_call.1} parent=1 // pred_check
      _
    $region3: #{tpu_custom_call.1} parent=1 // pred_check_branch
      %15 = sbr.rel (0) target = $region5
    $region4: #{tpu_custom_call.1} parent=1 // pred_region
      %s16 = sld [smem:[#allocation3]]
      %s17 = smul.u32 2, %s16
      %s19 = ssub.s32 512, 512
      %20 = vsyncadd [#allocation6], %s19
      %s21 = smul.addr %s17, 128
      %s22 = scalar_lea.hbm %s2, %s21
      %s23 = sshll.u32 [#allocation5], 4
      %s24 = int_to_ptr.vmem [resolvable:$true] %s23
      %29 = dma.hbm_to_vmem [thread:$0]  %s22, 512, %s24, [#allocation6], 256, 256, 16
    $region5: #{tpu_custom_call.1} parent=1 // pred_fallthru
      _
    // Predicated region
    $region6: #{tpu_custom_call.1} parent=1 // pred_check
      _
    $region7: #{tpu_custom_call.1} parent=1 // pred_check_branch
      %31 = sbr.rel (0) target = $region9
    $region8: #{tpu_custom_call.1} parent=1 // pred_region
      %s32 = sld [smem:[#allocation4]]
      %s33 = smul.u32 2, %s32
      %s35 = ssub.s32 512, 512
      %36 = vsyncadd [#allocation9], %s35
      %s37 = smul.addr %s33, 128
      %s38 = scalar_lea.hbm %s3, %s37
      %s39 = sshll.u32 [#allocation8], 4
      %s40 = int_to_ptr.vmem [resolvable:$true] %s39
      %45 = dma.hbm_to_vmem [thread:$0]  %s38, 512, %s40, [#allocation9], 256, 256, 16
    $region9: #{tpu_custom_call.1} parent=1 // pred_fallthru
      _
    // Predicated region
    $region10: #{tpu_custom_call.1} parent=1 // pred_check
      _
    $region11: #{tpu_custom_call.1} parent=1 // pred_check_branch
      %47 = sbr.rel (0) target = $region13
    $region12: #{tpu_custom_call.1} parent=1 // pred_region
      %48 = dma.done [#allocation6], 512
    $region13: #{tpu_custom_call.1} parent=1 // pred_fallthru
      _
    // Predicated region
    $region14: #{tpu_custom_call.1} parent=1 // pred_check
      _
    $region15: #{tpu_custom_call.1} parent=1 // pred_check_branch
      %50 = sbr.rel (0) target = $region17
    $region16: #{tpu_custom_call.1} parent=1 // pred_region
      %51 = dma.done [#allocation9], 512
    $region17: #{tpu_custom_call.1} parent=1 // pred_fallthru
      _
    %s52 = sld [smem:[#allocation3]]
    %s53 = smul.u32 2, %s52
    %s54 = sld [smem:[#allocation4]]
    %s55 = smul.u32 2, %s54
    %v56 = vld [vmem:[#allocation5] sm:$0xff]
    %v57 = vld [vmem:[#allocation5 + $0x8] sm:$0xff]
    %v58 = vld [vmem:[#allocation5 + $0x10] sm:$0xff]
    %v59 = vld [vmem:[#allocation5 + $0x18] sm:$0xff]
    %v64 = vcombine.low %v56, %v57
    %v65 = vcombine.high %v56, %v57
    %v67 = vunpack.c.l.s4 1966171168
    %v68 = vunpack.c.0.s8 %v67
    %v69 = vlaneseq
    %v70 = vshrl.u32 %v69, 7
    %v71 = vsub.s32 %v68, %v70
    %v72 = vrot.slane %v64, %v71
    %v74 = vunpack.c.l.s4 1966171168
    %v75 = vunpack.c.0.s8 %v74
    %v76 = vlaneseq
    %v77 = vshrl.u32 %v76, 7
    %v78 = vsub.s32 %v75, %v77
    %v79 = vrot.slane %v65, %v78
    %v80 = vcombine.high %v72, %v72
    %v81 = vcombine.high %v79, %v79
    %v83 = vunpack.c.l.s4 1966171168
    %v84 = vunpack.c.0.s8 %v83
    %v85 = vlaneseq
    %v86 = vshrl.u32 %v85, 7
    %v87 = vsub.s32 %v84, %v86
    %v88 = vrot.slane %v72, %v87
    %v90 = vunpack.c.l.s4 1966171168
    %v91 = vunpack.c.0.s8 %v90
    %v92 = vlaneseq
    %v93 = vshrl.u32 %v92, 7
    %v94 = vsub.s32 %v91, %v93
    %v95 = vrot.slane %v79, %v94
    %v97 = vunpack.c.l.s4 1966171168
    %v98 = vunpack.c.0.s8 %v97
    %v99 = vlaneseq
    %v100 = vshrl.u32 %v99, 7
    %v101 = vsub.s32 %v98, %v100
    %v102 = vrot.slane %v80, %v101
    %v104 = vunpack.c.l.s4 1966171168
    %v105 = vunpack.c.0.s8 %v104
    %v106 = vlaneseq
    %v107 = vshrl.u32 %v106, 7
    %v108 = vsub.s32 %v105, %v107
    %v109 = vrot.slane %v81, %v108
    %v110 = vcombine.high %v88, %v88
    %v111 = vcombine.high %v95, %v95
    %v112 = vcombine.high %v102, %v102
    %v113 = vcombine.high %v109, %v109
    %v114 = vcombine.low %v58, %v59
    %v115 = vcombine.high %v58, %v59
    %v117 = vunpack.c.l.s4 1966171168
    %v118 = vunpack.c.0.s8 %v117
    %v119 = vlaneseq
    %v120 = vshrl.u32 %v119, 7
    %v121 = vsub.s32 %v118, %v120
    %v122 = vrot.slane %v114, %v121
    %v124 = vunpack.c.l.s4 1966171168
    %v125 = vunpack.c.0.s8 %v124
    %v126 = vlaneseq
    %v127 = vshrl.u32 %v126, 7
    %v128 = vsub.s32 %v125, %v127
    %v129 = vrot.slane %v115, %v128
    %v130 = vcombine.high %v122, %v122
    %v131 = vcombine.high %v129, %v129
    %v133 = vunpack.c.l.s4 1966171168
    %v134 = vunpack.c.0.s8 %v133
    %v135 = vlaneseq
    %v136 = vshrl.u32 %v135, 7
    %v137 = vsub.s32 %v134, %v136
    %v138 = vrot.slane %v122, %v137
    %v140 = vunpack.c.l.s4 1966171168
    %v141 = vunpack.c.0.s8 %v140
    %v142 = vlaneseq
    %v143 = vshrl.u32 %v142, 7
    %v144 = vsub.s32 %v141, %v143
    %v145 = vrot.slane %v129, %v144
    %v147 = vunpack.c.l.s4 1966171168
    %v148 = vunpack.c.0.s8 %v147
    %v149 = vlaneseq
    %v150 = vshrl.u32 %v149, 7
    %v151 = vsub.s32 %v148, %v150
    %v152 = vrot.slane %v130, %v151
    %v154 = vunpack.c.l.s4 1966171168
    %v155 = vunpack.c.0.s8 %v154
    %v156 = vlaneseq
    %v157 = vshrl.u32 %v156, 7
    %v158 = vsub.s32 %v155, %v157
    %v159 = vrot.slane %v131, %v158
    %v160 = vcombine.high %v138, %v138
    %v161 = vcombine.high %v145, %v145
    %v162 = vcombine.high %v152, %v152
    %v163 = vcombine.high %v159, %v159
    %v164 = vlaneseq
    %v165 = vshrl.u32 %v164, 7
    %v166 = vsub.s32 0, %v165
    %v167 = vrot.slane %v88, %v166
    %v168 = vlaneseq
    %v169 = vshrl.u32 %v168, 7
    %v170 = vsub.s32 1, %v169
    %v171 = vrot.slane %v88, %v170
    %v172 = vlaneseq
    %v173 = vshrl.u32 %v172, 7
    %v174 = vsub.s32 0, %v173
    %v175 = vrot.slane %v102, %v174
    %v176 = vlaneseq
    %v177 = vshrl.u32 %v176, 7
    %v178 = vsub.s32 1, %v177
    %v179 = vrot.slane %v102, %v178
    %v180 = vlaneseq
    %v181 = vshrl.u32 %v180, 7
    %v182 = vsub.s32 0, %v181
    %v183 = vrot.slane %v110, %v182
    %v184 = vlaneseq
    %v185 = vshrl.u32 %v184, 7
    %v186 = vsub.s32 1, %v185
    %v187 = vrot.slane %v110, %v186
    %v188 = vlaneseq
    %v189 = vshrl.u32 %v188, 7
    %v190 = vsub.s32 0, %v189
    %v191 = vrot.slane %v112, %v190
    %v192 = vlaneseq
    %v193 = vshrl.u32 %v192, 7
    %v194 = vsub.s32 1, %v193
    %v195 = vrot.slane %v112, %v194
    %v196 = vlaneseq
    %v197 = vshrl.u32 %v196, 7
    %v198 = vsub.s32 0, %v197
    %v199 = vrot.slane %v95, %v198
    %v200 = vlaneseq
    %v201 = vshrl.u32 %v200, 7
    %v202 = vsub.s32 1, %v201
    %v203 = vrot.slane %v95, %v202
    %v204 = vlaneseq
    %v205 = vshrl.u32 %v204, 7
    %v206 = vsub.s32 0, %v205
    %v207 = vrot.slane %v109, %v206
    %v208 = vlaneseq
    %v209 = vshrl.u32 %v208, 7
    %v210 = vsub.s32 1, %v209
    %v211 = vrot.slane %v109, %v210
    %v212 = vlaneseq
    %v213 = vshrl.u32 %v212, 7
    %v214 = vsub.s32 0, %v213
    %v215 = vrot.slane %v111, %v214
    %v216 = vlaneseq
    %v217 = vshrl.u32 %v216, 7
    %v218 = vsub.s32 1, %v217
    %v219 = vrot.slane %v111, %v218
    %v220 = vlaneseq
    %v221 = vshrl.u32 %v220, 7
    %v222 = vsub.s32 0, %v221
    %v223 = vrot.slane %v113, %v222
    %v224 = vlaneseq
    %v225 = vshrl.u32 %v224, 7
    %v226 = vsub.s32 1, %v225
    %v227 = vrot.slane %v113, %v226
    %v228 = vlaneseq
    %v229 = vshrl.u32 %v228, 7
    %v230 = vsub.s32 0, %v229
    %v231 = vrot.slane %v138, %v230
    %v232 = vlaneseq
    %v233 = vshrl.u32 %v232, 7
    %v234 = vsub.s32 1, %v233
    %v235 = vrot.slane %v138, %v234
    %v236 = vlaneseq
    %v237 = vshrl.u32 %v236, 7
    %v238 = vsub.s32 0, %v237
    %v239 = vrot.slane %v152, %v238
    %v240 = vlaneseq
    %v241 = vshrl.u32 %v240, 7
    %v242 = vsub.s32 1, %v241
    %v243 = vrot.slane %v152, %v242
    %v244 = vlaneseq
    %v245 = vshrl.u32 %v244, 7
    %v246 = vsub.s32 0, %v245
    %v247 = vrot.slane %v160, %v246
    %v248 = vlaneseq
    %v249 = vshrl.u32 %v248, 7
    %v250 = vsub.s32 1, %v249
    %v251 = vrot.slane %v160, %v250
    %v252 = vlaneseq
    %v253 = vshrl.u32 %v252, 7
    %v254 = vsub.s32 0, %v253
    %v255 = vrot.slane %v162, %v254
    %v256 = vlaneseq
    %v257 = vshrl.u32 %v256, 7
    %v258 = vsub.s32 1, %v257
    %v259 = vrot.slane %v162, %v258
    %v260 = vlaneseq
    %v261 = vshrl.u32 %v260, 7
    %v262 = vsub.s32 0, %v261
    %v263 = vrot.slane %v145, %v262
    %v264 = vlaneseq
    %v265 = vshrl.u32 %v264, 7
    %v266 = vsub.s32 1, %v265
    %v267 = vrot.slane %v145, %v266
    %v268 = vlaneseq
    %v269 = vshrl.u32 %v268, 7
    %v270 = vsub.s32 0, %v269
    %v271 = vrot.slane %v159, %v270
    %v272 = vlaneseq
    %v273 = vshrl.u32 %v272, 7
    %v274 = vsub.s32 1, %v273
    %v275 = vrot.slane %v159, %v274
    %v276 = vlaneseq
    %v277 = vshrl.u32 %v276, 7
    %v278 = vsub.s32 0, %v277
    %v279 = vrot.slane %v161, %v278
    %v280 = vlaneseq
    %v281 = vshrl.u32 %v280, 7
    %v282 = vsub.s32 1, %v281
    %v283 = vrot.slane %v161, %v282
    %v284 = vlaneseq
    %v285 = vshrl.u32 %v284, 7
    %v286 = vsub.s32 0, %v285
    %v287 = vrot.slane %v163, %v286
    %v288 = vlaneseq
    %v289 = vshrl.u32 %v288, 7
    %v290 = vsub.s32 1, %v289
    %v291 = vrot.slane %v163, %v290
    %v324 = vsub.f32 %v56, %v167
    %v325 = vsub.f32 %v57, %v171
    %v326 = vsub.f32 %v58, %v167
    %v327 = vsub.f32 %v59, %v171
    %v328 = vsub.f32 %v56, %v175
    %v329 = vsub.f32 %v57, %v179
    %v330 = vsub.f32 %v58, %v175
    %v331 = vsub.f32 %v59, %v179
    %v332 = vsub.f32 %v56, %v183
    %v333 = vsub.f32 %v57, %v187
    %v334 = vsub.f32 %v58, %v183
    %v335 = vsub.f32 %v59, %v187
    %v336 = vsub.f32 %v56, %v191
    %v337 = vsub.f32 %v57, %v195
    %v338 = vsub.f32 %v58, %v191
    %v339 = vsub.f32 %v59, %v195
    %v340 = vsub.f32 %v56, %v199
    %v341 = vsub.f32 %v57, %v203
    %v342 = vsub.f32 %v58, %v199
    %v343 = vsub.f32 %v59, %v203
    %v344 = vsub.f32 %v56, %v207
    %v345 = vsub.f32 %v57, %v211
    %v346 = vsub.f32 %v58, %v207
    %v347 = vsub.f32 %v59, %v211
    %v348 = vsub.f32 %v56, %v215
    %v349 = vsub.f32 %v57, %v219
    %v350 = vsub.f32 %v58, %v215
    %v351 = vsub.f32 %v59, %v219
    %v352 = vsub.f32 %v56, %v223
    %v353 = vsub.f32 %v57, %v227
    %v354 = vsub.f32 %v58, %v223
    %v355 = vsub.f32 %v59, %v227
    %v356 = vsub.f32 %v56, %v231
    %v357 = vsub.f32 %v57, %v235
    %v358 = vsub.f32 %v58, %v231
    %v359 = vsub.f32 %v59, %v235
    %v360 = vsub.f32 %v56, %v239
    %v361 = vsub.f32 %v57, %v243
    %v362 = vsub.f32 %v58, %v239
    %v363 = vsub.f32 %v59, %v243
    %v364 = vsub.f32 %v56, %v247
    %v365 = vsub.f32 %v57, %v251
    %v366 = vsub.f32 %v58, %v247
    %v367 = vsub.f32 %v59, %v251
    %v368 = vsub.f32 %v56, %v255
    %v369 = vsub.f32 %v57, %v259
    %v370 = vsub.f32 %v58, %v255
    %v371 = vsub.f32 %v59, %v259
    %v372 = vsub.f32 %v56, %v263
    %v373 = vsub.f32 %v57, %v267
    %v374 = vsub.f32 %v58, %v263
    %v375 = vsub.f32 %v59, %v267
    %v376 = vsub.f32 %v56, %v271
    %v377 = vsub.f32 %v57, %v275
    %v378 = vsub.f32 %v58, %v271
    %v379 = vsub.f32 %v59, %v275
    %v380 = vsub.f32 %v56, %v279
    %v381 = vsub.f32 %v57, %v283
    %v382 = vsub.f32 %v58, %v279
    %v383 = vsub.f32 %v59, %v283
    %v384 = vsub.f32 %v56, %v287
    %v385 = vsub.f32 %v57, %v291
    %v386 = vsub.f32 %v58, %v287
    %v387 = vsub.f32 %v59, %v291
    %v388 = vand.u32 2147483647, %v324
    %v389 = vand.u32 2147483647, %v325
    %v390 = vand.u32 2147483647, %v326
    %v391 = vand.u32 2147483647, %v327
    %v392 = vand.u32 2147483647, %v328
    %v393 = vand.u32 2147483647, %v329
    %v394 = vand.u32 2147483647, %v330
    %v395 = vand.u32 2147483647, %v331
    %v396 = vand.u32 2147483647, %v332
    %v397 = vand.u32 2147483647, %v333
    %v398 = vand.u32 2147483647, %v334
    %v399 = vand.u32 2147483647, %v335
    %v400 = vand.u32 2147483647, %v336
    %v401 = vand.u32 2147483647, %v337
    %v402 = vand.u32 2147483647, %v338
    %v403 = vand.u32 2147483647, %v339
    %v404 = vand.u32 2147483647, %v340
    %v405 = vand.u32 2147483647, %v341
    %v406 = vand.u32 2147483647, %v342
    %v407 = vand.u32 2147483647, %v343
    %v408 = vand.u32 2147483647, %v344
    %v409 = vand.u32 2147483647, %v345
    %v410 = vand.u32 2147483647, %v346
    %v411 = vand.u32 2147483647, %v347
    %v412 = vand.u32 2147483647, %v348
    %v413 = vand.u32 2147483647, %v349
    %v414 = vand.u32 2147483647, %v350
    %v415 = vand.u32 2147483647, %v351
    %v416 = vand.u32 2147483647, %v352
    %v417 = vand.u32 2147483647, %v353
    %v418 = vand.u32 2147483647, %v354
    %v419 = vand.u32 2147483647, %v355
    %v420 = vand.u32 2147483647, %v356
    %v421 = vand.u32 2147483647, %v357
    %v422 = vand.u32 2147483647, %v358
    %v423 = vand.u32 2147483647, %v359
    %v424 = vand.u32 2147483647, %v360
    %v425 = vand.u32 2147483647, %v361
    %v426 = vand.u32 2147483647, %v362
    %v427 = vand.u32 2147483647, %v363
    %v428 = vand.u32 2147483647, %v364
    %v429 = vand.u32 2147483647, %v365
    %v430 = vand.u32 2147483647, %v366
    %v431 = vand.u32 2147483647, %v367
    %v432 = vand.u32 2147483647, %v368
    %v433 = vand.u32 2147483647, %v369
    %v434 = vand.u32 2147483647, %v370
    %v435 = vand.u32 2147483647, %v371
    %v436 = vand.u32 2147483647, %v372
    %v437 = vand.u32 2147483647, %v373
    %v438 = vand.u32 2147483647, %v374
    %v439 = vand.u32 2147483647, %v375
    %v440 = vand.u32 2147483647, %v376
    %v441 = vand.u32 2147483647, %v377
    %v442 = vand.u32 2147483647, %v378
    %v443 = vand.u32 2147483647, %v379
    %v444 = vand.u32 2147483647, %v380
    %v445 = vand.u32 2147483647, %v381
    %v446 = vand.u32 2147483647, %v382
    %v447 = vand.u32 2147483647, %v383
    %v448 = vand.u32 2147483647, %v384
    %v449 = vand.u32 2147483647, %v385
    %v450 = vand.u32 2147483647, %v386
    %v451 = vand.u32 2147483647, %v387
    %v452 = vadd.f32 %v388, %v392
    %v453 = vadd.f32 %v452, %v396
    %v454 = vadd.f32 %v453, %v400
    %v455 = vadd.f32 %v454, %v404
    %v456 = vadd.f32 %v455, %v408
    %v457 = vadd.f32 %v456, %v412
    %v458 = vadd.f32 %v457, %v416
    %v459 = vadd.f32 %v458, %v420
    %v460 = vadd.f32 %v459, %v424
    %v461 = vadd.f32 %v460, %v428
    %v462 = vadd.f32 %v461, %v432
    %v463 = vadd.f32 %v462, %v436
    %v464 = vadd.f32 %v463, %v440
    %v465 = vadd.f32 %v464, %v444
    %v466 = vadd.f32 %v465, %v448
    %v467 = vadd.f32 %v389, %v393
    %v468 = vadd.f32 %v467, %v397
    %v469 = vadd.f32 %v468, %v401
    %v470 = vadd.f32 %v469, %v405
    %v471 = vadd.f32 %v470, %v409
    %v472 = vadd.f32 %v471, %v413
    %v473 = vadd.f32 %v472, %v417
    %v474 = vadd.f32 %v473, %v421
    %v475 = vadd.f32 %v474, %v425
    %v476 = vadd.f32 %v475, %v429
    %v477 = vadd.f32 %v476, %v433
    %v478 = vadd.f32 %v477, %v437
    %v479 = vadd.f32 %v478, %v441
    %v480 = vadd.f32 %v479, %v445
    %v481 = vadd.f32 %v480, %v449
    %v482 = vadd.f32 %v390, %v394
    %v483 = vadd.f32 %v482, %v398
    %v484 = vadd.f32 %v483, %v402
    %v485 = vadd.f32 %v484, %v406
    %v486 = vadd.f32 %v485, %v410
    %v487 = vadd.f32 %v486, %v414
    %v488 = vadd.f32 %v487, %v418
    %v489 = vadd.f32 %v488, %v422
    %v490 = vadd.f32 %v489, %v426
    %v491 = vadd.f32 %v490, %v430
    %v492 = vadd.f32 %v491, %v434
    %v493 = vadd.f32 %v492, %v438
    %v494 = vadd.f32 %v493, %v442
    %v495 = vadd.f32 %v494, %v446
    %v496 = vadd.f32 %v495, %v450
    %v497 = vadd.f32 %v391, %v395
    %v498 = vadd.f32 %v497, %v399
    %v499 = vadd.f32 %v498, %v403
    %v500 = vadd.f32 %v499, %v407
    %v501 = vadd.f32 %v500, %v411
    %v502 = vadd.f32 %v501, %v415
    %v503 = vadd.f32 %v502, %v419
    %v504 = vadd.f32 %v503, %v423
    %v505 = vadd.f32 %v504, %v427
    %v506 = vadd.f32 %v505, %v431
    %v507 = vadd.f32 %v506, %v435
    %v508 = vadd.f32 %v507, %v439
    %v509 = vadd.f32 %v508, %v443
    %v510 = vadd.f32 %v509, %v447
    %v511 = vadd.f32 %v510, %v451
    %v512 = vmul.f32 %v466, 0.0625
    %v513 = vmul.f32 %v481, 0.0625
    %v514 = vmul.f32 %v496, 0.0625
    %v515 = vmul.f32 %v511, 0.0625
    %v516 = vadd.f32 %v512, %v514
    %v517 = vrot.slane %v516, 4
    %v518 = vadd.f32 %v516, %v517
    %v519 = vrot.slane %v518, 2
    %v520 = vadd.f32 %v518, %v519
    %v521 = vrot.slane %v520, 1
    %v522 = vadd.f32 %v520, %v521
    %v523 = vadd.f32 %v513, %v515
    %v524 = vrot.slane %v523, 4
    %v525 = vadd.f32 %v523, %v524
    %v526 = vrot.slane %v525, 2
    %v527 = vadd.f32 %v525, %v526
    %v528 = vrot.slane %v527, 1
    %v529 = vadd.f32 %v527, %v528
    %v530 = vmul.f32 %v522, 0.0625
    %v531 = vmul.f32 %v529, 0.0625
    %v532 = vmul.f32 %v530, 0.5
    %v533 = vmul.f32 %v531, 0.5
    %v534 = vsub.f32 %v512, %v532
    %v535 = vsub.f32 %v513, %v533
    %v536 = vsub.f32 %v514, %v532
    %v537 = vsub.f32 %v515, %v533
    %v538 = vsub.f32 %v388, %v534
    %v539 = vsub.f32 %v389, %v535
    %v540 = vsub.f32 %v390, %v536
    %v541 = vsub.f32 %v391, %v537
    %v542 = vsub.f32 %v392, %v534
    %v543 = vsub.f32 %v393, %v535
    %v544 = vsub.f32 %v394, %v536
    %v545 = vsub.f32 %v395, %v537
    %v546 = vsub.f32 %v396, %v534
    %v547 = vsub.f32 %v397, %v535
    %v548 = vsub.f32 %v398, %v536
    %v549 = vsub.f32 %v399, %v537
    %v550 = vsub.f32 %v400, %v534
    %v551 = vsub.f32 %v401, %v535
    %v552 = vsub.f32 %v402, %v536
    %v553 = vsub.f32 %v403, %v537
    %v554 = vsub.f32 %v404, %v534
    %v555 = vsub.f32 %v405, %v535
    %v556 = vsub.f32 %v406, %v536
    %v557 = vsub.f32 %v407, %v537
    %v558 = vsub.f32 %v408, %v534
    %v559 = vsub.f32 %v409, %v535
    %v560 = vsub.f32 %v410, %v536
    %v561 = vsub.f32 %v411, %v537
    %v562 = vsub.f32 %v412, %v534
    %v563 = vsub.f32 %v413, %v535
    %v564 = vsub.f32 %v414, %v536
    %v565 = vsub.f32 %v415, %v537
    %v566 = vsub.f32 %v416, %v534
    %v567 = vsub.f32 %v417, %v535
    %v568 = vsub.f32 %v418, %v536
    %v569 = vsub.f32 %v419, %v537
    %v570 = vsub.f32 %v420, %v534
    %v571 = vsub.f32 %v421, %v535
    %v572 = vsub.f32 %v422, %v536
    %v573 = vsub.f32 %v423, %v537
    %v574 = vsub.f32 %v424, %v534
    %v575 = vsub.f32 %v425, %v535
    %v576 = vsub.f32 %v426, %v536
    %v577 = vsub.f32 %v427, %v537
    %v578 = vsub.f32 %v428, %v534
    %v579 = vsub.f32 %v429, %v535
    %v580 = vsub.f32 %v430, %v536
    %v581 = vsub.f32 %v431, %v537
    %v582 = vsub.f32 %v432, %v534
    %v583 = vsub.f32 %v433, %v535
    %v584 = vsub.f32 %v434, %v536
    %v585 = vsub.f32 %v435, %v537
    %v586 = vsub.f32 %v436, %v534
    %v587 = vsub.f32 %v437, %v535
    %v588 = vsub.f32 %v438, %v536
    %v589 = vsub.f32 %v439, %v537
    %v590 = vsub.f32 %v440, %v534
    %v591 = vsub.f32 %v441, %v535
    %v592 = vsub.f32 %v442, %v536
    %v593 = vsub.f32 %v443, %v537
    %v594 = vsub.f32 %v444, %v534
    %v595 = vsub.f32 %v445, %v535
    %v596 = vsub.f32 %v446, %v536
    %v597 = vsub.f32 %v447, %v537
    %v598 = vsub.f32 %v448, %v534
    %v599 = vsub.f32 %v449, %v535
    %v600 = vsub.f32 %v450, %v536
    %v601 = vsub.f32 %v451, %v537
    %v606 = vcombine.low %v534, %v535
    %v607 = vcombine.high %v534, %v535
    %v609 = vunpack.c.l.s4 1966171168
    %v610 = vunpack.c.0.s8 %v609
    %v611 = vlaneseq
    %v612 = vshrl.u32 %v611, 7
    %v613 = vsub.s32 %v610, %v612
    %v614 = vrot.slane %v606, %v613
    %v616 = vunpack.c.l.s4 1966171168
    %v617 = vunpack.c.0.s8 %v616
    %v618 = vlaneseq
    %v619 = vshrl.u32 %v618, 7
    %v620 = vsub.s32 %v617, %v619
    %v621 = vrot.slane %v607, %v620
    %v622 = vcombine.high %v614, %v614
    %v623 = vcombine.high %v621, %v621
    %v625 = vunpack.c.l.s4 1966171168
    %v626 = vunpack.c.0.s8 %v625
    %v627 = vlaneseq
    %v628 = vshrl.u32 %v627, 7
    %v629 = vsub.s32 %v626, %v628
    %v630 = vrot.slane %v614, %v629
    %v632 = vunpack.c.l.s4 1966171168
    %v633 = vunpack.c.0.s8 %v632
    %v634 = vlaneseq
    %v635 = vshrl.u32 %v634, 7
    %v636 = vsub.s32 %v633, %v635
    %v637 = vrot.slane %v621, %v636
    %v639 = vunpack.c.l.s4 1966171168
    %v640 = vunpack.c.0.s8 %v639
    %v641 = vlaneseq
    %v642 = vshrl.u32 %v641, 7
    %v643 = vsub.s32 %v640, %v642
    %v644 = vrot.slane %v622, %v643
    %v646 = vunpack.c.l.s4 1966171168
    %v647 = vunpack.c.0.s8 %v646
    %v648 = vlaneseq
    %v649 = vshrl.u32 %v648, 7
    %v650 = vsub.s32 %v647, %v649
    %v651 = vrot.slane %v623, %v650
    %v652 = vcombine.high %v630, %v630
    %v653 = vcombine.high %v637, %v637
    %v654 = vcombine.high %v644, %v644
    %v655 = vcombine.high %v651, %v651
    %v656 = vcombine.low %v536, %v537
    %v657 = vcombine.high %v536, %v537
    %v659 = vunpack.c.l.s4 1966171168
    %v660 = vunpack.c.0.s8 %v659
    %v661 = vlaneseq
    %v662 = vshrl.u32 %v661, 7
    %v663 = vsub.s32 %v660, %v662
    %v664 = vrot.slane %v656, %v663
    %v666 = vunpack.c.l.s4 1966171168
    %v667 = vunpack.c.0.s8 %v666
    %v668 = vlaneseq
    %v669 = vshrl.u32 %v668, 7
    %v670 = vsub.s32 %v667, %v669
    %v671 = vrot.slane %v657, %v670
    %v672 = vcombine.high %v664, %v664
    %v673 = vcombine.high %v671, %v671
    %v675 = vunpack.c.l.s4 1966171168
    %v676 = vunpack.c.0.s8 %v675
    %v677 = vlaneseq
    %v678 = vshrl.u32 %v677, 7
    %v679 = vsub.s32 %v676, %v678
    %v680 = vrot.slane %v664, %v679
    %v682 = vunpack.c.l.s4 1966171168
    %v683 = vunpack.c.0.s8 %v682
    %v684 = vlaneseq
    %v685 = vshrl.u32 %v684, 7
    %v686 = vsub.s32 %v683, %v685
    %v687 = vrot.slane %v671, %v686
    %v689 = vunpack.c.l.s4 1966171168
    %v690 = vunpack.c.0.s8 %v689
    %v691 = vlaneseq
    %v692 = vshrl.u32 %v691, 7
    %v693 = vsub.s32 %v690, %v692
    %v694 = vrot.slane %v672, %v693
    %v696 = vunpack.c.l.s4 1966171168
    %v697 = vunpack.c.0.s8 %v696
    %v698 = vlaneseq
    %v699 = vshrl.u32 %v698, 7
    %v700 = vsub.s32 %v697, %v699
    %v701 = vrot.slane %v673, %v700
    %v702 = vcombine.high %v680, %v680
    %v703 = vcombine.high %v687, %v687
    %v704 = vcombine.high %v694, %v694
    %v705 = vcombine.high %v701, %v701
    %v706 = vlaneseq
    %v707 = vshrl.u32 %v706, 7
    %v708 = vsub.s32 0, %v707
    %v709 = vrot.slane %v630, %v708
    %v710 = vlaneseq
    %v711 = vshrl.u32 %v710, 7
    %v712 = vsub.s32 1, %v711
    %v713 = vrot.slane %v630, %v712
    %v714 = vlaneseq
    %v715 = vshrl.u32 %v714, 7
    %v716 = vsub.s32 0, %v715
    %v717 = vrot.slane %v644, %v716
    %v718 = vlaneseq
    %v719 = vshrl.u32 %v718, 7
    %v720 = vsub.s32 1, %v719
    %v721 = vrot.slane %v644, %v720
    %v722 = vlaneseq
    %v723 = vshrl.u32 %v722, 7
    %v724 = vsub.s32 0, %v723
    %v725 = vrot.slane %v652, %v724
    %v726 = vlaneseq
    %v727 = vshrl.u32 %v726, 7
    %v728 = vsub.s32 1, %v727
    %v729 = vrot.slane %v652, %v728
    %v730 = vlaneseq
    %v731 = vshrl.u32 %v730, 7
    %v732 = vsub.s32 0, %v731
    %v733 = vrot.slane %v654, %v732
    %v734 = vlaneseq
    %v735 = vshrl.u32 %v734, 7
    %v736 = vsub.s32 1, %v735
    %v737 = vrot.slane %v654, %v736
    %v738 = vlaneseq
    %v739 = vshrl.u32 %v738, 7
    %v740 = vsub.s32 0, %v739
    %v741 = vrot.slane %v637, %v740
    %v742 = vlaneseq
    %v743 = vshrl.u32 %v742, 7
    %v744 = vsub.s32 1, %v743
    %v745 = vrot.slane %v637, %v744
    %v746 = vlaneseq
    %v747 = vshrl.u32 %v746, 7
    %v748 = vsub.s32 0, %v747
    %v749 = vrot.slane %v651, %v748
    %v750 = vlaneseq
    %v751 = vshrl.u32 %v750, 7
    %v752 = vsub.s32 1, %v751
    %v753 = vrot.slane %v651, %v752
    %v754 = vlaneseq
    %v755 = vshrl.u32 %v754, 7
    %v756 = vsub.s32 0, %v755
    %v757 = vrot.slane %v653, %v756
    %v758 = vlaneseq
    %v759 = vshrl.u32 %v758, 7
    %v760 = vsub.s32 1, %v759
    %v761 = vrot.slane %v653, %v760
    %v762 = vlaneseq
    %v763 = vshrl.u32 %v762, 7
    %v764 = vsub.s32 0, %v763
    %v765 = vrot.slane %v655, %v764
    %v766 = vlaneseq
    %v767 = vshrl.u32 %v766, 7
    %v768 = vsub.s32 1, %v767
    %v769 = vrot.slane %v655, %v768
    %v770 = vlaneseq
    %v771 = vshrl.u32 %v770, 7
    %v772 = vsub.s32 0, %v771
    %v773 = vrot.slane %v680, %v772
    %v774 = vlaneseq
    %v775 = vshrl.u32 %v774, 7
    %v776 = vsub.s32 1, %v775
    %v777 = vrot.slane %v680, %v776
    %v778 = vlaneseq
    %v779 = vshrl.u32 %v778, 7
    %v780 = vsub.s32 0, %v779
    %v781 = vrot.slane %v694, %v780
    %v782 = vlaneseq
    %v783 = vshrl.u32 %v782, 7
    %v784 = vsub.s32 1, %v783
    %v785 = vrot.slane %v694, %v784
    %v786 = vlaneseq
    %v787 = vshrl.u32 %v786, 7
    %v788 = vsub.s32 0, %v787
    %v789 = vrot.slane %v702, %v788
    %v790 = vlaneseq
    %v791 = vshrl.u32 %v790, 7
    %v792 = vsub.s32 1, %v791
    %v793 = vrot.slane %v702, %v792
    %v794 = vlaneseq
    %v795 = vshrl.u32 %v794, 7
    %v796 = vsub.s32 0, %v795
    %v797 = vrot.slane %v704, %v796
    %v798 = vlaneseq
    %v799 = vshrl.u32 %v798, 7
    %v800 = vsub.s32 1, %v799
    %v801 = vrot.slane %v704, %v800
    %v802 = vlaneseq
    %v803 = vshrl.u32 %v802, 7
    %v804 = vsub.s32 0, %v803
    %v805 = vrot.slane %v687, %v804
    %v806 = vlaneseq
    %v807 = vshrl.u32 %v806, 7
    %v808 = vsub.s32 1, %v807
    %v809 = vrot.slane %v687, %v808
    %v810 = vlaneseq
    %v811 = vshrl.u32 %v810, 7
    %v812 = vsub.s32 0, %v811
    %v813 = vrot.slane %v701, %v812
    %v814 = vlaneseq
    %v815 = vshrl.u32 %v814, 7
    %v816 = vsub.s32 1, %v815
    %v817 = vrot.slane %v701, %v816
    %v818 = vlaneseq
    %v819 = vshrl.u32 %v818, 7
    %v820 = vsub.s32 0, %v819
    %v821 = vrot.slane %v703, %v820
    %v822 = vlaneseq
    %v823 = vshrl.u32 %v822, 7
    %v824 = vsub.s32 1, %v823
    %v825 = vrot.slane %v703, %v824
    %v826 = vlaneseq
    %v827 = vshrl.u32 %v826, 7
    %v828 = vsub.s32 0, %v827
    %v829 = vrot.slane %v705, %v828
    %v830 = vlaneseq
    %v831 = vshrl.u32 %v830, 7
    %v832 = vsub.s32 1, %v831
    %v833 = vrot.slane %v705, %v832
    %v866 = vsub.f32 %v538, %v709
    %v867 = vsub.f32 %v539, %v713
    %v868 = vsub.f32 %v540, %v709
    %v869 = vsub.f32 %v541, %v713
    %v870 = vsub.f32 %v542, %v717
    %v871 = vsub.f32 %v543, %v721
    %v872 = vsub.f32 %v544, %v717
    %v873 = vsub.f32 %v545, %v721
    %v874 = vsub.f32 %v546, %v725
    %v875 = vsub.f32 %v547, %v729
    %v876 = vsub.f32 %v548, %v725
    %v877 = vsub.f32 %v549, %v729
    %v878 = vsub.f32 %v550, %v733
    %v879 = vsub.f32 %v551, %v737
    %v880 = vsub.f32 %v552, %v733
    %v881 = vsub.f32 %v553, %v737
    %v882 = vsub.f32 %v554, %v741
    %v883 = vsub.f32 %v555, %v745
    %v884 = vsub.f32 %v556, %v741
    %v885 = vsub.f32 %v557, %v745
    %v886 = vsub.f32 %v558, %v749
    %v887 = vsub.f32 %v559, %v753
    %v888 = vsub.f32 %v560, %v749
    %v889 = vsub.f32 %v561, %v753
    %v890 = vsub.f32 %v562, %v757
    %v891 = vsub.f32 %v563, %v761
    %v892 = vsub.f32 %v564, %v757
    %v893 = vsub.f32 %v565, %v761
    %v894 = vsub.f32 %v566, %v765
    %v895 = vsub.f32 %v567, %v769
    %v896 = vsub.f32 %v568, %v765
    %v897 = vsub.f32 %v569, %v769
    %v898 = vsub.f32 %v570, %v773
    %v899 = vsub.f32 %v571, %v777
    %v900 = vsub.f32 %v572, %v773
    %v901 = vsub.f32 %v573, %v777
    %v902 = vsub.f32 %v574, %v781
    %v903 = vsub.f32 %v575, %v785
    %v904 = vsub.f32 %v576, %v781
    %v905 = vsub.f32 %v577, %v785
    %v906 = vsub.f32 %v578, %v789
    %v907 = vsub.f32 %v579, %v793
    %v908 = vsub.f32 %v580, %v789
    %v909 = vsub.f32 %v581, %v793
    %v910 = vsub.f32 %v582, %v797
    %v911 = vsub.f32 %v583, %v801
    %v912 = vsub.f32 %v584, %v797
    %v913 = vsub.f32 %v585, %v801
    %v914 = vsub.f32 %v586, %v805
    %v915 = vsub.f32 %v587, %v809
    %v916 = vsub.f32 %v588, %v805
    %v917 = vsub.f32 %v589, %v809
    %v918 = vsub.f32 %v590, %v813
    %v919 = vsub.f32 %v591, %v817
    %v920 = vsub.f32 %v592, %v813
    %v921 = vsub.f32 %v593, %v817
    %v922 = vsub.f32 %v594, %v821
    %v923 = vsub.f32 %v595, %v825
    %v924 = vsub.f32 %v596, %v821
    %v925 = vsub.f32 %v597, %v825
    %v926 = vsub.f32 %v598, %v829
    %v927 = vsub.f32 %v599, %v833
    %v928 = vsub.f32 %v600, %v829
    %v929 = vsub.f32 %v601, %v833
    %v930 = vpack.c.bf16 %v868, %v866
    %v931 = vpack.c.bf16 %v869, %v867
    %v932 = vpack.c.bf16 %v872, %v870
    %v933 = vpack.c.bf16 %v873, %v871
    %v934 = vpack.c.bf16 %v876, %v874
    %v935 = vpack.c.bf16 %v877, %v875
    %v936 = vpack.c.bf16 %v880, %v878
    %v937 = vpack.c.bf16 %v881, %v879
    %v938 = vpack.c.bf16 %v884, %v882
    %v939 = vpack.c.bf16 %v885, %v883
    %v940 = vpack.c.bf16 %v888, %v886
    %v941 = vpack.c.bf16 %v889, %v887
    %v942 = vpack.c.bf16 %v892, %v890
    %v943 = vpack.c.bf16 %v893, %v891
    %v944 = vpack.c.bf16 %v896, %v894
    %v945 = vpack.c.bf16 %v897, %v895
    %v946 = vpack.c.bf16 %v900, %v898
    %v947 = vpack.c.bf16 %v901, %v899
    %v948 = vpack.c.bf16 %v904, %v902
    %v949 = vpack.c.bf16 %v905, %v903
    %v950 = vpack.c.bf16 %v908, %v906
    %v951 = vpack.c.bf16 %v909, %v907
    %v952 = vpack.c.bf16 %v912, %v910
    %v953 = vpack.c.bf16 %v913, %v911
    %v954 = vpack.c.bf16 %v916, %v914
    %v955 = vpack.c.bf16 %v917, %v915
    %v956 = vpack.c.bf16 %v920, %v918
    %v957 = vpack.c.bf16 %v921, %v919
    %v958 = vpack.c.bf16 %v924, %v922
    %v959 = vpack.c.bf16 %v925, %v923
    %v960 = vpack.c.bf16 %v928, %v926
    %v961 = vpack.c.bf16 %v929, %v927
    %v962 = vld [vmem:[#allocation8] sm:$0xff]
    %v963 = vld [vmem:[#allocation8 + $0x8] sm:$0xff]
    %v964 = vld [vmem:[#allocation8 + $0x10] sm:$0xff]
    %v965 = vld [vmem:[#allocation8 + $0x18] sm:$0xff]
    %v970 = vcombine.low %v962, %v963
    %v971 = vcombine.high %v962, %v963
    %v973 = vunpack.c.l.s4 1966171168
    %v974 = vunpack.c.0.s8 %v973
    %v975 = vlaneseq
    %v976 = vshrl.u32 %v975, 7
    %v977 = vsub.s32 %v974, %v976
    %v978 = vrot.slane %v970, %v977
    %v980 = vunpack.c.l.s4 1966171168
    %v981 = vunpack.c.0.s8 %v980
    %v982 = vlaneseq
    %v983 = vshrl.u32 %v982, 7
    %v984 = vsub.s32 %v981, %v983
    %v985 = vrot.slane %v971, %v984
    %v986 = vcombine.high %v978, %v978
    %v987 = vcombine.high %v985, %v985
    %v989 = vunpack.c.l.s4 1966171168
    %v990 = vunpack.c.0.s8 %v989
    %v991 = vlaneseq
    %v992 = vshrl.u32 %v991, 7
    %v993 = vsub.s32 %v990, %v992
    %v994 = vrot.slane %v978, %v993
    %v996 = vunpack.c.l.s4 1966171168
    %v997 = vunpack.c.0.s8 %v996
    %v998 = vlaneseq
    %v999 = vshrl.u32 %v998, 7
    %v1000 = vsub.s32 %v997, %v999
    %v1001 = vrot.slane %v985, %v1000
    %v1003 = vunpack.c.l.s4 1966171168
    %v1004 = vunpack.c.0.s8 %v1003
    %v1005 = vlaneseq
    %v1006 = vshrl.u32 %v1005, 7
    %v1007 = vsub.s32 %v1004, %v1006
    %v1008 = vrot.slane %v986, %v1007
    %v1010 = vunpack.c.l.s4 1966171168
    %v1011 = vunpack.c.0.s8 %v1010
    %v1012 = vlaneseq
    %v1013 = vshrl.u32 %v1012, 7
    %v1014 = vsub.s32 %v1011, %v1013
    %v1015 = vrot.slane %v987, %v1014
    %v1016 = vcombine.high %v994, %v994
    %v1017 = vcombine.high %v1001, %v1001
    %v1018 = vcombine.high %v1008, %v1008
    %v1019 = vcombine.high %v1015, %v1015
    %v1020 = vcombine.low %v964, %v965
    %v1021 = vcombine.high %v964, %v965
    %v1023 = vunpack.c.l.s4 1966171168
    %v1024 = vunpack.c.0.s8 %v1023
    %v1025 = vlaneseq
    %v1026 = vshrl.u32 %v1025, 7
    %v1027 = vsub.s32 %v1024, %v1026
    %v1028 = vrot.slane %v1020, %v1027
    %v1030 = vunpack.c.l.s4 1966171168
    %v1031 = vunpack.c.0.s8 %v1030
    %v1032 = vlaneseq
    %v1033 = vshrl.u32 %v1032, 7
    %v1034 = vsub.s32 %v1031, %v1033
    %v1035 = vrot.slane %v1021, %v1034
    %v1036 = vcombine.high %v1028, %v1028
    %v1037 = vcombine.high %v1035, %v1035
    %v1039 = vunpack.c.l.s4 1966171168
    %v1040 = vunpack.c.0.s8 %v1039
    %v1041 = vlaneseq
    %v1042 = vshrl.u32 %v1041, 7
    %v1043 = vsub.s32 %v1040, %v1042
    %v1044 = vrot.slane %v1028, %v1043
    %v1046 = vunpack.c.l.s4 1966171168
    %v1047 = vunpack.c.0.s8 %v1046
    %v1048 = vlaneseq
    %v1049 = vshrl.u32 %v1048, 7
    %v1050 = vsub.s32 %v1047, %v1049
    %v1051 = vrot.slane %v1035, %v1050
    %v1053 = vunpack.c.l.s4 1966171168
    %v1054 = vunpack.c.0.s8 %v1053
    %v1055 = vlaneseq
    %v1056 = vshrl.u32 %v1055, 7
    %v1057 = vsub.s32 %v1054, %v1056
    %v1058 = vrot.slane %v1036, %v1057
    %v1060 = vunpack.c.l.s4 1966171168
    %v1061 = vunpack.c.0.s8 %v1060
    %v1062 = vlaneseq
    %v1063 = vshrl.u32 %v1062, 7
    %v1064 = vsub.s32 %v1061, %v1063
    %v1065 = vrot.slane %v1037, %v1064
    %v1066 = vcombine.high %v1044, %v1044
    %v1067 = vcombine.high %v1051, %v1051
    %v1068 = vcombine.high %v1058, %v1058
    %v1069 = vcombine.high %v1065, %v1065
    %v1070 = vlaneseq
    %v1071 = vshrl.u32 %v1070, 7
    %v1072 = vsub.s32 0, %v1071
    %v1073 = vrot.slane %v994, %v1072
    %v1074 = vlaneseq
    %v1075 = vshrl.u32 %v1074, 7
    %v1076 = vsub.s32 1, %v1075
    %v1077 = vrot.slane %v994, %v1076
    %v1078 = vlaneseq
    %v1079 = vshrl.u32 %v1078, 7
    %v1080 = vsub.s32 0, %v1079
    %v1081 = vrot.slane %v1008, %v1080
    %v1082 = vlaneseq
    %v1083 = vshrl.u32 %v1082, 7
    %v1084 = vsub.s32 1, %v1083
    %v1085 = vrot.slane %v1008, %v1084
    %v1086 = vlaneseq
    %v1087 = vshrl.u32 %v1086, 7
    %v1088 = vsub.s32 0, %v1087
    %v1089 = vrot.slane %v1016, %v1088
    %v1090 = vlaneseq
    %v1091 = vshrl.u32 %v1090, 7
    %v1092 = vsub.s32 1, %v1091
    %v1093 = vrot.slane %v1016, %v1092
    %v1094 = vlaneseq
    %v1095 = vshrl.u32 %v1094, 7
    %v1096 = vsub.s32 0, %v1095
    %v1097 = vrot.slane %v1018, %v1096
    %v1098 = vlaneseq
    %v1099 = vshrl.u32 %v1098, 7
    %v1100 = vsub.s32 1, %v1099
    %v1101 = vrot.slane %v1018, %v1100
    %v1102 = vlaneseq
    %v1103 = vshrl.u32 %v1102, 7
    %v1104 = vsub.s32 0, %v1103
    %v1105 = vrot.slane %v1001, %v1104
    %v1106 = vlaneseq
    %v1107 = vshrl.u32 %v1106, 7
    %v1108 = vsub.s32 1, %v1107
    %v1109 = vrot.slane %v1001, %v1108
    %v1110 = vlaneseq
    %v1111 = vshrl.u32 %v1110, 7
    %v1112 = vsub.s32 0, %v1111
    %v1113 = vrot.slane %v1015, %v1112
    %v1114 = vlaneseq
    %v1115 = vshrl.u32 %v1114, 7
    %v1116 = vsub.s32 1, %v1115
    %v1117 = vrot.slane %v1015, %v1116
    %v1118 = vlaneseq
    %v1119 = vshrl.u32 %v1118, 7
    %v1120 = vsub.s32 0, %v1119
    %v1121 = vrot.slane %v1017, %v1120
    %v1122 = vlaneseq
    %v1123 = vshrl.u32 %v1122, 7
    %v1124 = vsub.s32 1, %v1123
    %v1125 = vrot.slane %v1017, %v1124
    %v1126 = vlaneseq
    %v1127 = vshrl.u32 %v1126, 7
    %v1128 = vsub.s32 0, %v1127
    %v1129 = vrot.slane %v1019, %v1128
    %v1130 = vlaneseq
    %v1131 = vshrl.u32 %v1130, 7
    %v1132 = vsub.s32 1, %v1131
    %v1133 = vrot.slane %v1019, %v1132
    %v1134 = vlaneseq
    %v1135 = vshrl.u32 %v1134, 7
    %v1136 = vsub.s32 0, %v1135
    %v1137 = vrot.slane %v1044, %v1136
    %v1138 = vlaneseq
    %v1139 = vshrl.u32 %v1138, 7
    %v1140 = vsub.s32 1, %v1139
    %v1141 = vrot.slane %v1044, %v1140
    %v1142 = vlaneseq
    %v1143 = vshrl.u32 %v1142, 7
    %v1144 = vsub.s32 0, %v1143
    %v1145 = vrot.slane %v1058, %v1144
    %v1146 = vlaneseq
    %v1147 = vshrl.u32 %v1146, 7
    %v1148 = vsub.s32 1, %v1147
    %v1149 = vrot.slane %v1058, %v1148
    %v1150 = vlaneseq
    %v1151 = vshrl.u32 %v1150, 7
    %v1152 = vsub.s32 0, %v1151
    %v1153 = vrot.slane %v1066, %v1152
    %v1154 = vlaneseq
    %v1155 = vshrl.u32 %v1154, 7
    %v1156 = vsub.s32 1, %v1155
    %v1157 = vrot.slane %v1066, %v1156
    %v1158 = vlaneseq
    %v1159 = vshrl.u32 %v1158, 7
    %v1160 = vsub.s32 0, %v1159
    %v1161 = vrot.slane %v1068, %v1160
    %v1162 = vlaneseq
    %v1163 = vshrl.u32 %v1162, 7
    %v1164 = vsub.s32 1, %v1163
    %v1165 = vrot.slane %v1068, %v1164
    %v1166 = vlaneseq
    %v1167 = vshrl.u32 %v1166, 7
    %v1168 = vsub.s32 0, %v1167
    %v1169 = vrot.slane %v1051, %v1168
    %v1170 = vlaneseq
    %v1171 = vshrl.u32 %v1170, 7
    %v1172 = vsub.s32 1, %v1171
    %v1173 = vrot.slane %v1051, %v1172
    %v1174 = vlaneseq
    %v1175 = vshrl.u32 %v1174, 7
    %v1176 = vsub.s32 0, %v1175
    %v1177 = vrot.slane %v1065, %v1176
    %v1178 = vlaneseq
    %v1179 = vshrl.u32 %v1178, 7
    %v1180 = vsub.s32 1, %v1179
    %v1181 = vrot.slane %v1065, %v1180
    %v1182 = vlaneseq
    %v1183 = vshrl.u32 %v1182, 7
    %v1184 = vsub.s32 0, %v1183
    %v1185 = vrot.slane %v1067, %v1184
    %v1186 = vlaneseq
    %v1187 = vshrl.u32 %v1186, 7
    %v1188 = vsub.s32 1, %v1187
    %v1189 = vrot.slane %v1067, %v1188
    %v1190 = vlaneseq
    %v1191 = vshrl.u32 %v1190, 7
    %v1192 = vsub.s32 0, %v1191
    %v1193 = vrot.slane %v1069, %v1192
    %v1194 = vlaneseq
    %v1195 = vshrl.u32 %v1194, 7
    %v1196 = vsub.s32 1, %v1195
    %v1197 = vrot.slane %v1069, %v1196
    %v1230 = vsub.f32 %v962, %v1073
    %v1231 = vsub.f32 %v963, %v1077
    %v1232 = vsub.f32 %v964, %v1073
    %v1233 = vsub.f32 %v965, %v1077
    %v1234 = vsub.f32 %v962, %v1081
    %v1235 = vsub.f32 %v963, %v1085
    %v1236 = vsub.f32 %v964, %v1081
    %v1237 = vsub.f32 %v965, %v1085
    %v1238 = vsub.f32 %v962, %v1089
    %v1239 = vsub.f32 %v963, %v1093
    %v1240 = vsub.f32 %v964, %v1089
    %v1241 = vsub.f32 %v965, %v1093
    %v1242 = vsub.f32 %v962, %v1097
    %v1243 = vsub.f32 %v963, %v1101
    %v1244 = vsub.f32 %v964, %v1097
    %v1245 = vsub.f32 %v965, %v1101
    %v1246 = vsub.f32 %v962, %v1105
    %v1247 = vsub.f32 %v963, %v1109
    %v1248 = vsub.f32 %v964, %v1105
    %v1249 = vsub.f32 %v965, %v1109
    %v1250 = vsub.f32 %v962, %v1113
    %v1251 = vsub.f32 %v963, %v1117
    %v1252 = vsub.f32 %v964, %v1113
    %v1253 = vsub.f32 %v965, %v1117
    %v1254 = vsub.f32 %v962, %v1121
    %v1255 = vsub.f32 %v963, %v1125
    %v1256 = vsub.f32 %v964, %v1121
    %v1257 = vsub.f32 %v965, %v1125
    %v1258 = vsub.f32 %v962, %v1129
    %v1259 = vsub.f32 %v963, %v1133
    %v1260 = vsub.f32 %v964, %v1129
    %v1261 = vsub.f32 %v965, %v1133
    %v1262 = vsub.f32 %v962, %v1137
    %v1263 = vsub.f32 %v963, %v1141
    %v1264 = vsub.f32 %v964, %v1137
    %v1265 = vsub.f32 %v965, %v1141
    %v1266 = vsub.f32 %v962, %v1145
    %v1267 = vsub.f32 %v963, %v1149
    %v1268 = vsub.f32 %v964, %v1145
    %v1269 = vsub.f32 %v965, %v1149
    %v1270 = vsub.f32 %v962, %v1153
    %v1271 = vsub.f32 %v963, %v1157
    %v1272 = vsub.f32 %v964, %v1153
    %v1273 = vsub.f32 %v965, %v1157
    %v1274 = vsub.f32 %v962, %v1161
    %v1275 = vsub.f32 %v963, %v1165
    %v1276 = vsub.f32 %v964, %v1161
    %v1277 = vsub.f32 %v965, %v1165
    %v1278 = vsub.f32 %v962, %v1169
    %v1279 = vsub.f32 %v963, %v1173
    %v1280 = vsub.f32 %v964, %v1169
    %v1281 = vsub.f32 %v965, %v1173
    %v1282 = vsub.f32 %v962, %v1177
    %v1283 = vsub.f32 %v963, %v1181
    %v1284 = vsub.f32 %v964, %v1177
    %v1285 = vsub.f32 %v965, %v1181
    %v1286 = vsub.f32 %v962, %v1185
    %v1287 = vsub.f32 %v963, %v1189
    %v1288 = vsub.f32 %v964, %v1185
    %v1289 = vsub.f32 %v965, %v1189
    %v1290 = vsub.f32 %v962, %v1193
    %v1291 = vsub.f32 %v963, %v1197
    %v1292 = vsub.f32 %v964, %v1193
    %v1293 = vsub.f32 %v965, %v1197
    %v1294 = vand.u32 2147483647, %v1230
    %v1295 = vand.u32 2147483647, %v1231
    %v1296 = vand.u32 2147483647, %v1232
    %v1297 = vand.u32 2147483647, %v1233
    %v1298 = vand.u32 2147483647, %v1234
    %v1299 = vand.u32 2147483647, %v1235
    %v1300 = vand.u32 2147483647, %v1236
    %v1301 = vand.u32 2147483647, %v1237
    %v1302 = vand.u32 2147483647, %v1238
    %v1303 = vand.u32 2147483647, %v1239
    %v1304 = vand.u32 2147483647, %v1240
    %v1305 = vand.u32 2147483647, %v1241
    %v1306 = vand.u32 2147483647, %v1242
    %v1307 = vand.u32 2147483647, %v1243
    %v1308 = vand.u32 2147483647, %v1244
    %v1309 = vand.u32 2147483647, %v1245
    %v1310 = vand.u32 2147483647, %v1246
    %v1311 = vand.u32 2147483647, %v1247
    %v1312 = vand.u32 2147483647, %v1248
    %v1313 = vand.u32 2147483647, %v1249
    %v1314 = vand.u32 2147483647, %v1250
    %v1315 = vand.u32 2147483647, %v1251
    %v1316 = vand.u32 2147483647, %v1252
    %v1317 = vand.u32 2147483647, %v1253
    %v1318 = vand.u32 2147483647, %v1254
    %v1319 = vand.u32 2147483647, %v1255
    %v1320 = vand.u32 2147483647, %v1256
    %v1321 = vand.u32 2147483647, %v1257
    %v1322 = vand.u32 2147483647, %v1258
    %v1323 = vand.u32 2147483647, %v1259
    %v1324 = vand.u32 2147483647, %v1260
    %v1325 = vand.u32 2147483647, %v1261
    %v1326 = vand.u32 2147483647, %v1262
    %v1327 = vand.u32 2147483647, %v1263
    %v1328 = vand.u32 2147483647, %v1264
    %v1329 = vand.u32 2147483647, %v1265
    %v1330 = vand.u32 2147483647, %v1266
    %v1331 = vand.u32 2147483647, %v1267
    %v1332 = vand.u32 2147483647, %v1268
    %v1333 = vand.u32 2147483647, %v1269
    %v1334 = vand.u32 2147483647, %v1270
    %v1335 = vand.u32 2147483647, %v1271
    %v1336 = vand.u32 2147483647, %v1272
    %v1337 = vand.u32 2147483647, %v1273
    %v1338 = vand.u32 2147483647, %v1274
    %v1339 = vand.u32 2147483647, %v1275
    %v1340 = vand.u32 2147483647, %v1276
    %v1341 = vand.u32 2147483647, %v1277
    %v1342 = vand.u32 2147483647, %v1278
    %v1343 = vand.u32 2147483647, %v1279
    %v1344 = vand.u32 2147483647, %v1280
    %v1345 = vand.u32 2147483647, %v1281
    %v1346 = vand.u32 2147483647, %v1282
    %v1347 = vand.u32 2147483647, %v1283
    %v1348 = vand.u32 2147483647, %v1284
    %v1349 = vand.u32 2147483647, %v1285
    %v1350 = vand.u32 2147483647, %v1286
    %v1351 = vand.u32 2147483647, %v1287
    %v1352 = vand.u32 2147483647, %v1288
    %v1353 = vand.u32 2147483647, %v1289
    %v1354 = vand.u32 2147483647, %v1290
    %v1355 = vand.u32 2147483647, %v1291
    %v1356 = vand.u32 2147483647, %v1292
    %v1357 = vand.u32 2147483647, %v1293
    %v1358 = vadd.f32 %v1294, %v1298
    %v1359 = vadd.f32 %v1358, %v1302
    %v1360 = vadd.f32 %v1359, %v1306
    %v1361 = vadd.f32 %v1360, %v1310
    %v1362 = vadd.f32 %v1361, %v1314
    %v1363 = vadd.f32 %v1362, %v1318
    %v1364 = vadd.f32 %v1363, %v1322
    %v1365 = vadd.f32 %v1364, %v1326
    %v1366 = vadd.f32 %v1365, %v1330
    %v1367 = vadd.f32 %v1366, %v1334
    %v1368 = vadd.f32 %v1367, %v1338
    %v1369 = vadd.f32 %v1368, %v1342
    %v1370 = vadd.f32 %v1369, %v1346
    %v1371 = vadd.f32 %v1370, %v1350
    %v1372 = vadd.f32 %v1371, %v1354
    %v1373 = vadd.f32 %v1295, %v1299
    %v1374 = vadd.f32 %v1373, %v1303
    %v1375 = vadd.f32 %v1374, %v1307
    %v1376 = vadd.f32 %v1375, %v1311
    %v1377 = vadd.f32 %v1376, %v1315
    %v1378 = vadd.f32 %v1377, %v1319
    %v1379 = vadd.f32 %v1378, %v1323
    %v1380 = vadd.f32 %v1379, %v1327
    %v1381 = vadd.f32 %v1380, %v1331
    %v1382 = vadd.f32 %v1381, %v1335
    %v1383 = vadd.f32 %v1382, %v1339
    %v1384 = vadd.f32 %v1383, %v1343
    %v1385 = vadd.f32 %v1384, %v1347
    %v1386 = vadd.f32 %v1385, %v1351
    %v1387 = vadd.f32 %v1386, %v1355
    %v1388 = vadd.f32 %v1296, %v1300
    %v1389 = vadd.f32 %v1388, %v1304
    %v1390 = vadd.f32 %v1389, %v1308
    %v1391 = vadd.f32 %v1390, %v1312
    %v1392 = vadd.f32 %v1391, %v1316
    %v1393 = vadd.f32 %v1392, %v1320
    %v1394 = vadd.f32 %v1393, %v1324
    %v1395 = vadd.f32 %v1394, %v1328
    %v1396 = vadd.f32 %v1395, %v1332
    %v1397 = vadd.f32 %v1396, %v1336
    %v1398 = vadd.f32 %v1397, %v1340
    %v1399 = vadd.f32 %v1398, %v1344
    %v1400 = vadd.f32 %v1399, %v1348
    %v1401 = vadd.f32 %v1400, %v1352
    %v1402 = vadd.f32 %v1401, %v1356
    %v1403 = vadd.f32 %v1297, %v1301
    %v1404 = vadd.f32 %v1403, %v1305
    %v1405 = vadd.f32 %v1404, %v1309
    %v1406 = vadd.f32 %v1405, %v1313
    %v1407 = vadd.f32 %v1406, %v1317
    %v1408 = vadd.f32 %v1407, %v1321
    %v1409 = vadd.f32 %v1408, %v1325
    %v1410 = vadd.f32 %v1409, %v1329
    %v1411 = vadd.f32 %v1410, %v1333
    %v1412 = vadd.f32 %v1411, %v1337
    %v1413 = vadd.f32 %v1412, %v1341
    %v1414 = vadd.f32 %v1413, %v1345
    %v1415 = vadd.f32 %v1414, %v1349
    %v1416 = vadd.f32 %v1415, %v1353
    %v1417 = vadd.f32 %v1416, %v1357
    %v1418 = vmul.f32 %v1372, 0.0625
    %v1419 = vmul.f32 %v1387, 0.0625
    %v1420 = vmul.f32 %v1402, 0.0625
    %v1421 = vmul.f32 %v1417, 0.0625
    %v1422 = vadd.f32 %v1418, %v1420
    %v1423 = vrot.slane %v1422, 4
    %v1424 = vadd.f32 %v1422, %v1423
    %v1425 = vrot.slane %v1424, 2
    %v1426 = vadd.f32 %v1424, %v1425
    %v1427 = vrot.slane %v1426, 1
    %v1428 = vadd.f32 %v1426, %v1427
    %v1429 = vadd.f32 %v1419, %v1421
    %v1430 = vrot.slane %v1429, 4
    %v1431 = vadd.f32 %v1429, %v1430
    %v1432 = vrot.slane %v1431, 2
    %v1433 = vadd.f32 %v1431, %v1432
    %v1434 = vrot.slane %v1433, 1
    %v1435 = vadd.f32 %v1433, %v1434
    %v1436 = vmul.f32 %v1428, 0.0625
    %v1437 = vmul.f32 %v1435, 0.0625
    %v1438 = vmul.f32 %v1436, 0.5
    %v1439 = vmul.f32 %v1437, 0.5
    %v1440 = vsub.f32 %v1418, %v1438
    %v1441 = vsub.f32 %v1419, %v1439
    %v1442 = vsub.f32 %v1420, %v1438
    %v1443 = vsub.f32 %v1421, %v1439
    %v1444 = vsub.f32 %v1294, %v1440
    %v1445 = vsub.f32 %v1295, %v1441
    %v1446 = vsub.f32 %v1296, %v1442
    %v1447 = vsub.f32 %v1297, %v1443
    %v1448 = vsub.f32 %v1298, %v1440
    %v1449 = vsub.f32 %v1299, %v1441
    %v1450 = vsub.f32 %v1300, %v1442
    %v1451 = vsub.f32 %v1301, %v1443
    %v1452 = vsub.f32 %v1302, %v1440
    %v1453 = vsub.f32 %v1303, %v1441
    %v1454 = vsub.f32 %v1304, %v1442
    %v1455 = vsub.f32 %v1305, %v1443
    %v1456 = vsub.f32 %v1306, %v1440
    %v1457 = vsub.f32 %v1307, %v1441
    %v1458 = vsub.f32 %v1308, %v1442
    %v1459 = vsub.f32 %v1309, %v1443
    %v1460 = vsub.f32 %v1310, %v1440
    %v1461 = vsub.f32 %v1311, %v1441
    %v1462 = vsub.f32 %v1312, %v1442
    %v1463 = vsub.f32 %v1313, %v1443
    %v1464 = vsub.f32 %v1314, %v1440
    %v1465 = vsub.f32 %v1315, %v1441
    %v1466 = vsub.f32 %v1316, %v1442
    %v1467 = vsub.f32 %v1317, %v1443
    %v1468 = vsub.f32 %v1318, %v1440
    %v1469 = vsub.f32 %v1319, %v1441
    %v1470 = vsub.f32 %v1320, %v1442
    %v1471 = vsub.f32 %v1321, %v1443
    %v1472 = vsub.f32 %v1322, %v1440
    %v1473 = vsub.f32 %v1323, %v1441
    %v1474 = vsub.f32 %v1324, %v1442
    %v1475 = vsub.f32 %v1325, %v1443
    %v1476 = vsub.f32 %v1326, %v1440
    %v1477 = vsub.f32 %v1327, %v1441
    %v1478 = vsub.f32 %v1328, %v1442
    %v1479 = vsub.f32 %v1329, %v1443
    %v1480 = vsub.f32 %v1330, %v1440
    %v1481 = vsub.f32 %v1331, %v1441
    %v1482 = vsub.f32 %v1332, %v1442
    %v1483 = vsub.f32 %v1333, %v1443
    %v1484 = vsub.f32 %v1334, %v1440
    %v1485 = vsub.f32 %v1335, %v1441
    %v1486 = vsub.f32 %v1336, %v1442
    %v1487 = vsub.f32 %v1337, %v1443
    %v1488 = vsub.f32 %v1338, %v1440
    %v1489 = vsub.f32 %v1339, %v1441
    %v1490 = vsub.f32 %v1340, %v1442
    %v1491 = vsub.f32 %v1341, %v1443
    %v1492 = vsub.f32 %v1342, %v1440
    %v1493 = vsub.f32 %v1343, %v1441
    %v1494 = vsub.f32 %v1344, %v1442
    %v1495 = vsub.f32 %v1345, %v1443
    %v1496 = vsub.f32 %v1346, %v1440
    %v1497 = vsub.f32 %v1347, %v1441
    %v1498 = vsub.f32 %v1348, %v1442
    %v1499 = vsub.f32 %v1349, %v1443
    %v1500 = vsub.f32 %v1350, %v1440
    %v1501 = vsub.f32 %v1351, %v1441
    %v1502 = vsub.f32 %v1352, %v1442
    %v1503 = vsub.f32 %v1353, %v1443
    %v1504 = vsub.f32 %v1354, %v1440
    %v1505 = vsub.f32 %v1355, %v1441
    %v1506 = vsub.f32 %v1356, %v1442
    %v1507 = vsub.f32 %v1357, %v1443
    %v1512 = vcombine.low %v1440, %v1441
    %v1513 = vcombine.high %v1440, %v1441
    %v1515 = vunpack.c.l.s4 1966171168
    %v1516 = vunpack.c.0.s8 %v1515
    %v1517 = vlaneseq
    %v1518 = vshrl.u32 %v1517, 7
    %v1519 = vsub.s32 %v1516, %v1518
    %v1520 = vrot.slane %v1512, %v1519
    %v1522 = vunpack.c.l.s4 1966171168
    %v1523 = vunpack.c.0.s8 %v1522
    %v1524 = vlaneseq
    %v1525 = vshrl.u32 %v1524, 7
    %v1526 = vsub.s32 %v1523, %v1525
    %v1527 = vrot.slane %v1513, %v1526
    %v1528 = vcombine.high %v1520, %v1520
    %v1529 = vcombine.high %v1527, %v1527
    %v1531 = vunpack.c.l.s4 1966171168
    %v1532 = vunpack.c.0.s8 %v1531
    %v1533 = vlaneseq
    %v1534 = vshrl.u32 %v1533, 7
    %v1535 = vsub.s32 %v1532, %v1534
    %v1536 = vrot.slane %v1520, %v1535
    %v1538 = vunpack.c.l.s4 1966171168
    %v1539 = vunpack.c.0.s8 %v1538
    %v1540 = vlaneseq
    %v1541 = vshrl.u32 %v1540, 7
    %v1542 = vsub.s32 %v1539, %v1541
    %v1543 = vrot.slane %v1527, %v1542
    %v1545 = vunpack.c.l.s4 1966171168
    %v1546 = vunpack.c.0.s8 %v1545
    %v1547 = vlaneseq
    %v1548 = vshrl.u32 %v1547, 7
    %v1549 = vsub.s32 %v1546, %v1548
    %v1550 = vrot.slane %v1528, %v1549
    %v1552 = vunpack.c.l.s4 1966171168
    %v1553 = vunpack.c.0.s8 %v1552
    %v1554 = vlaneseq
    %v1555 = vshrl.u32 %v1554, 7
    %v1556 = vsub.s32 %v1553, %v1555
    %v1557 = vrot.slane %v1529, %v1556
    %v1558 = vcombine.high %v1536, %v1536
    %v1559 = vcombine.high %v1543, %v1543
    %v1560 = vcombine.high %v1550, %v1550
    %v1561 = vcombine.high %v1557, %v1557
    %v1562 = vcombine.low %v1442, %v1443
    %v1563 = vcombine.high %v1442, %v1443
    %v1565 = vunpack.c.l.s4 1966171168
    %v1566 = vunpack.c.0.s8 %v1565
    %v1567 = vlaneseq
    %v1568 = vshrl.u32 %v1567, 7
    %v1569 = vsub.s32 %v1566, %v1568
    %v1570 = vrot.slane %v1562, %v1569
    %v1572 = vunpack.c.l.s4 1966171168
    %v1573 = vunpack.c.0.s8 %v1572
    %v1574 = vlaneseq
    %v1575 = vshrl.u32 %v1574, 7
    %v1576 = vsub.s32 %v1573, %v1575
    %v1577 = vrot.slane %v1563, %v1576
    %v1578 = vcombine.high %v1570, %v1570
    %v1579 = vcombine.high %v1577, %v1577
    %v1581 = vunpack.c.l.s4 1966171168
    %v1582 = vunpack.c.0.s8 %v1581
    %v1583 = vlaneseq
    %v1584 = vshrl.u32 %v1583, 7
    %v1585 = vsub.s32 %v1582, %v1584
    %v1586 = vrot.slane %v1570, %v1585
    %v1588 = vunpack.c.l.s4 1966171168
    %v1589 = vunpack.c.0.s8 %v1588
    %v1590 = vlaneseq
    %v1591 = vshrl.u32 %v1590, 7
    %v1592 = vsub.s32 %v1589, %v1591
    %v1593 = vrot.slane %v1577, %v1592
    %v1595 = vunpack.c.l.s4 1966171168
    %v1596 = vunpack.c.0.s8 %v1595
    %v1597 = vlaneseq
    %v1598 = vshrl.u32 %v1597, 7
    %v1599 = vsub.s32 %v1596, %v1598
    %v1600 = vrot.slane %v1578, %v1599
    %v1602 = vunpack.c.l.s4 1966171168
    %v1603 = vunpack.c.0.s8 %v1602
    %v1604 = vlaneseq
    %v1605 = vshrl.u32 %v1604, 7
    %v1606 = vsub.s32 %v1603, %v1605
    %v1607 = vrot.slane %v1579, %v1606
    %v1608 = vcombine.high %v1586, %v1586
    %v1609 = vcombine.high %v1593, %v1593
    %v1610 = vcombine.high %v1600, %v1600
    %v1611 = vcombine.high %v1607, %v1607
    %v1612 = vlaneseq
    %v1613 = vshrl.u32 %v1612, 7
    %v1614 = vsub.s32 0, %v1613
    %v1615 = vrot.slane %v1536, %v1614
    %v1616 = vlaneseq
    %v1617 = vshrl.u32 %v1616, 7
    %v1618 = vsub.s32 1, %v1617
    %v1619 = vrot.slane %v1536, %v1618
    %v1620 = vlaneseq
    %v1621 = vshrl.u32 %v1620, 7
    %v1622 = vsub.s32 0, %v1621
    %v1623 = vrot.slane %v1550, %v1622
    %v1624 = vlaneseq
    %v1625 = vshrl.u32 %v1624, 7
    %v1626 = vsub.s32 1, %v1625
    %v1627 = vrot.slane %v1550, %v1626
    %v1628 = vlaneseq
    %v1629 = vshrl.u32 %v1628, 7
    %v1630 = vsub.s32 0, %v1629
    %v1631 = vrot.slane %v1558, %v1630
    %v1632 = vlaneseq
    %v1633 = vshrl.u32 %v1632, 7
    %v1634 = vsub.s32 1, %v1633
    %v1635 = vrot.slane %v1558, %v1634
    %v1636 = vlaneseq
    %v1637 = vshrl.u32 %v1636, 7
    %v1638 = vsub.s32 0, %v1637
    %v1639 = vrot.slane %v1560, %v1638
    %v1640 = vlaneseq
    %v1641 = vshrl.u32 %v1640, 7
    %v1642 = vsub.s32 1, %v1641
    %v1643 = vrot.slane %v1560, %v1642
    %v1644 = vlaneseq
    %v1645 = vshrl.u32 %v1644, 7
    %v1646 = vsub.s32 0, %v1645
    %v1647 = vrot.slane %v1543, %v1646
    %v1648 = vlaneseq
    %v1649 = vshrl.u32 %v1648, 7
    %v1650 = vsub.s32 1, %v1649
    %v1651 = vrot.slane %v1543, %v1650
    %v1652 = vlaneseq
    %v1653 = vshrl.u32 %v1652, 7
    %v1654 = vsub.s32 0, %v1653
    %v1655 = vrot.slane %v1557, %v1654
    %v1656 = vlaneseq
    %v1657 = vshrl.u32 %v1656, 7
    %v1658 = vsub.s32 1, %v1657
    %v1659 = vrot.slane %v1557, %v1658
    %v1660 = vlaneseq
    %v1661 = vshrl.u32 %v1660, 7
    %v1662 = vsub.s32 0, %v1661
    %v1663 = vrot.slane %v1559, %v1662
    %v1664 = vlaneseq
    %v1665 = vshrl.u32 %v1664, 7
    %v1666 = vsub.s32 1, %v1665
    %v1667 = vrot.slane %v1559, %v1666
    %v1668 = vlaneseq
    %v1669 = vshrl.u32 %v1668, 7
    %v1670 = vsub.s32 0, %v1669
    %v1671 = vrot.slane %v1561, %v1670
    %v1672 = vlaneseq
    %v1673 = vshrl.u32 %v1672, 7
    %v1674 = vsub.s32 1, %v1673
    %v1675 = vrot.slane %v1561, %v1674
    %v1676 = vlaneseq
    %v1677 = vshrl.u32 %v1676, 7
    %v1678 = vsub.s32 0, %v1677
    %v1679 = vrot.slane %v1586, %v1678
    %v1680 = vlaneseq
    %v1681 = vshrl.u32 %v1680, 7
    %v1682 = vsub.s32 1, %v1681
    %v1683 = vrot.slane %v1586, %v1682
    %v1684 = vlaneseq
    %v1685 = vshrl.u32 %v1684, 7
    %v1686 = vsub.s32 0, %v1685
    %v1687 = vrot.slane %v1600, %v1686
    %v1688 = vlaneseq
    %v1689 = vshrl.u32 %v1688, 7
    %v1690 = vsub.s32 1, %v1689
    %v1691 = vrot.slane %v1600, %v1690
    %v1692 = vlaneseq
    %v1693 = vshrl.u32 %v1692, 7
    %v1694 = vsub.s32 0, %v1693
    %v1695 = vrot.slane %v1608, %v1694
    %v1696 = vlaneseq
    %v1697 = vshrl.u32 %v1696, 7
    %v1698 = vsub.s32 1, %v1697
    %v1699 = vrot.slane %v1608, %v1698
    %v1700 = vlaneseq
    %v1701 = vshrl.u32 %v1700, 7
    %v1702 = vsub.s32 0, %v1701
    %v1703 = vrot.slane %v1610, %v1702
    %v1704 = vlaneseq
    %v1705 = vshrl.u32 %v1704, 7
    %v1706 = vsub.s32 1, %v1705
    %v1707 = vrot.slane %v1610, %v1706
    %v1708 = vlaneseq
    %v1709 = vshrl.u32 %v1708, 7
    %v1710 = vsub.s32 0, %v1709
    %v1711 = vrot.slane %v1593, %v1710
    %v1712 = vlaneseq
    %v1713 = vshrl.u32 %v1712, 7
    %v1714 = vsub.s32 1, %v1713
    %v1715 = vrot.slane %v1593, %v1714
    %v1716 = vlaneseq
    %v1717 = vshrl.u32 %v1716, 7
    %v1718 = vsub.s32 0, %v1717
    %v1719 = vrot.slane %v1607, %v1718
    %v1720 = vlaneseq
    %v1721 = vshrl.u32 %v1720, 7
    %v1722 = vsub.s32 1, %v1721
    %v1723 = vrot.slane %v1607, %v1722
    %v1724 = vlaneseq
    %v1725 = vshrl.u32 %v1724, 7
    %v1726 = vsub.s32 0, %v1725
    %v1727 = vrot.slane %v1609, %v1726
    %v1728 = vlaneseq
    %v1729 = vshrl.u32 %v1728, 7
    %v1730 = vsub.s32 1, %v1729
    %v1731 = vrot.slane %v1609, %v1730
    %v1732 = vlaneseq
    %v1733 = vshrl.u32 %v1732, 7
    %v1734 = vsub.s32 0, %v1733
    %v1735 = vrot.slane %v1611, %v1734
    %v1736 = vlaneseq
    %v1737 = vshrl.u32 %v1736, 7
    %v1738 = vsub.s32 1, %v1737
    %v1739 = vrot.slane %v1611, %v1738
    %v1772 = vsub.f32 %v1444, %v1615
    %v1773 = vsub.f32 %v1445, %v1619
    %v1774 = vsub.f32 %v1446, %v1615
    %v1775 = vsub.f32 %v1447, %v1619
    %v1776 = vsub.f32 %v1448, %v1623
    %v1777 = vsub.f32 %v1449, %v1627
    %v1778 = vsub.f32 %v1450, %v1623
    %v1779 = vsub.f32 %v1451, %v1627
    %v1780 = vsub.f32 %v1452, %v1631
    %v1781 = vsub.f32 %v1453, %v1635
    %v1782 = vsub.f32 %v1454, %v1631
    %v1783 = vsub.f32 %v1455, %v1635
    %v1784 = vsub.f32 %v1456, %v1639
    %v1785 = vsub.f32 %v1457, %v1643
    %v1786 = vsub.f32 %v1458, %v1639
    %v1787 = vsub.f32 %v1459, %v1643
    %v1788 = vsub.f32 %v1460, %v1647
    %v1789 = vsub.f32 %v1461, %v1651
    %v1790 = vsub.f32 %v1462, %v1647
    %v1791 = vsub.f32 %v1463, %v1651
    %v1792 = vsub.f32 %v1464, %v1655
    %v1793 = vsub.f32 %v1465, %v1659
    %v1794 = vsub.f32 %v1466, %v1655
    %v1795 = vsub.f32 %v1467, %v1659
    %v1796 = vsub.f32 %v1468, %v1663
    %v1797 = vsub.f32 %v1469, %v1667
    %v1798 = vsub.f32 %v1470, %v1663
    %v1799 = vsub.f32 %v1471, %v1667
    %v1800 = vsub.f32 %v1472, %v1671
    %v1801 = vsub.f32 %v1473, %v1675
    %v1802 = vsub.f32 %v1474, %v1671
    %v1803 = vsub.f32 %v1475, %v1675
    %v1804 = vsub.f32 %v1476, %v1679
    %v1805 = vsub.f32 %v1477, %v1683
    %v1806 = vsub.f32 %v1478, %v1679
    %v1807 = vsub.f32 %v1479, %v1683
    %v1808 = vsub.f32 %v1480, %v1687
    %v1809 = vsub.f32 %v1481, %v1691
    %v1810 = vsub.f32 %v1482, %v1687
    %v1811 = vsub.f32 %v1483, %v1691
    %v1812 = vsub.f32 %v1484, %v1695
    %v1813 = vsub.f32 %v1485, %v1699
    %v1814 = vsub.f32 %v1486, %v1695
    %v1815 = vsub.f32 %v1487, %v1699
    %v1816 = vsub.f32 %v1488, %v1703
    %v1817 = vsub.f32 %v1489, %v1707
    %v1818 = vsub.f32 %v1490, %v1703
    %v1819 = vsub.f32 %v1491, %v1707
    %v1820 = vsub.f32 %v1492, %v1711
    %v1821 = vsub.f32 %v1493, %v1715
    %v1822 = vsub.f32 %v1494, %v1711
    %v1823 = vsub.f32 %v1495, %v1715
    %v1824 = vsub.f32 %v1496, %v1719
    %v1825 = vsub.f32 %v1497, %v1723
    %v1826 = vsub.f32 %v1498, %v1719
    %v1827 = vsub.f32 %v1499, %v1723
    %v1828 = vsub.f32 %v1500, %v1727
    %v1829 = vsub.f32 %v1501, %v1731
    %v1830 = vsub.f32 %v1502, %v1727
    %v1831 = vsub.f32 %v1503, %v1731
    %v1832 = vsub.f32 %v1504, %v1735
    %v1833 = vsub.f32 %v1505, %v1739
    %v1834 = vsub.f32 %v1506, %v1735
    %v1835 = vsub.f32 %v1507, %v1739
    %v1836 = vpack.c.bf16 %v1774, %v1772
    %v1837 = vpack.c.bf16 %v1775, %v1773
    %v1838 = vpack.c.bf16 %v1778, %v1776
    %v1839 = vpack.c.bf16 %v1779, %v1777
    %v1840 = vpack.c.bf16 %v1782, %v1780
    %v1841 = vpack.c.bf16 %v1783, %v1781
    %v1842 = vpack.c.bf16 %v1786, %v1784
    %v1843 = vpack.c.bf16 %v1787, %v1785
    %v1844 = vpack.c.bf16 %v1790, %v1788
    %v1845 = vpack.c.bf16 %v1791, %v1789
    %v1846 = vpack.c.bf16 %v1794, %v1792
    %v1847 = vpack.c.bf16 %v1795, %v1793
    %v1848 = vpack.c.bf16 %v1798, %v1796
    %v1849 = vpack.c.bf16 %v1799, %v1797
    %v1850 = vpack.c.bf16 %v1802, %v1800
    %v1851 = vpack.c.bf16 %v1803, %v1801
    %v1852 = vpack.c.bf16 %v1806, %v1804
    %v1853 = vpack.c.bf16 %v1807, %v1805
    %v1854 = vpack.c.bf16 %v1810, %v1808
    %v1855 = vpack.c.bf16 %v1811, %v1809
    %v1856 = vpack.c.bf16 %v1814, %v1812
    %v1857 = vpack.c.bf16 %v1815, %v1813
    %v1858 = vpack.c.bf16 %v1818, %v1816
    %v1859 = vpack.c.bf16 %v1819, %v1817
    %v1860 = vpack.c.bf16 %v1822, %v1820
    %v1861 = vpack.c.bf16 %v1823, %v1821
    %v1862 = vpack.c.bf16 %v1826, %v1824
    %v1863 = vpack.c.bf16 %v1827, %v1825
    %v1864 = vpack.c.bf16 %v1830, %v1828
    %v1865 = vpack.c.bf16 %v1831, %v1829
    %v1866 = vpack.c.bf16 %v1834, %v1832
    %v1867 = vpack.c.bf16 %v1835, %v1833
    %1868 = vxpose.xlu0.c.b16.start [1/8] %v930, 128
    %1869 = vxpose.xlu0.c.b16.cont [2/8] %v932, 128
    %1870 = vxpose.xlu0.c.b16.cont [3/8] %v934, 128
    %1871 = vxpose.xlu0.c.b16.cont [4/8] %v936, 128
    %1872 = vxpose.xlu0.c.b16.cont [5/8] %v938, 128
    %1873 = vxpose.xlu0.c.b16.cont [6/8] %v940, 128
    %1874 = vxpose.xlu0.c.b16.cont [7/8] %v942, 128
    %1875 = vxpose.xlu0.c.b16.end [8/8] %v944, 128
    %v1876 = vpop.trf.xlu0
    %v1877 = vpop.trf.xlu0
    %v1878 = vpop.trf.xlu0
    %v1879 = vpop.trf.xlu0
    %v1880 = vpop.trf.xlu0
    %v1881 = vpop.trf.xlu0
    %v1882 = vpop.trf.xlu0
    %v1883 = vpop.trf.xlu0
    %1884 = vxpose.xlu0.c.b16.start [1/8] %v931, 128
    %1885 = vxpose.xlu0.c.b16.cont [2/8] %v933, 128
    %1886 = vxpose.xlu0.c.b16.cont [3/8] %v935, 128
    %1887 = vxpose.xlu0.c.b16.cont [4/8] %v937, 128
    %1888 = vxpose.xlu0.c.b16.cont [5/8] %v939, 128
    %1889 = vxpose.xlu0.c.b16.cont [6/8] %v941, 128
    %1890 = vxpose.xlu0.c.b16.cont [7/8] %v943, 128
    %1891 = vxpose.xlu0.c.b16.end [8/8] %v945, 128
    %v1892 = vpop.trf.xlu0
    %v1893 = vpop.trf.xlu0
    %v1894 = vpop.trf.xlu0
    %v1895 = vpop.trf.xlu0
    %v1896 = vpop.trf.xlu0
    %v1897 = vpop.trf.xlu0
    %v1898 = vpop.trf.xlu0
    %v1899 = vpop.trf.xlu0
    %1900 = vxpose.xlu0.c.b16.start [1/8] %v946, 128
    %1901 = vxpose.xlu0.c.b16.cont [2/8] %v948, 128
    %1902 = vxpose.xlu0.c.b16.cont [3/8] %v950, 128
    %1903 = vxpose.xlu0.c.b16.cont [4/8] %v952, 128
    %1904 = vxpose.xlu0.c.b16.cont [5/8] %v954, 128
    %1905 = vxpose.xlu0.c.b16.cont [6/8] %v956, 128
    %1906 = vxpose.xlu0.c.b16.cont [7/8] %v958, 128
    %1907 = vxpose.xlu0.c.b16.end [8/8] %v960, 128
    %v1908 = vpop.trf.xlu0
    %v1909 = vpop.trf.xlu0
    %v1910 = vpop.trf.xlu0
    %v1911 = vpop.trf.xlu0
    %v1912 = vpop.trf.xlu0
    %v1913 = vpop.trf.xlu0
    %v1914 = vpop.trf.xlu0
    %v1915 = vpop.trf.xlu0
    %1916 = vxpose.xlu0.c.b16.start [1/8] %v947, 128
    %1917 = vxpose.xlu0.c.b16.cont [2/8] %v949, 128
    %1918 = vxpose.xlu0.c.b16.cont [3/8] %v951, 128
    %1919 = vxpose.xlu0.c.b16.cont [4/8] %v953, 128
    %1920 = vxpose.xlu0.c.b16.cont [5/8] %v955, 128
    %1921 = vxpose.xlu0.c.b16.cont [6/8] %v957, 128
    %1922 = vxpose.xlu0.c.b16.cont [7/8] %v959, 128
    %1923 = vxpose.xlu0.c.b16.end [8/8] %v961, 128
    %v1924 = vpop.trf.xlu0
    %v1925 = vpop.trf.xlu0
    %v1926 = vpop.trf.xlu0
    %v1927 = vpop.trf.xlu0
    %v1928 = vpop.trf.xlu0
    %v1929 = vpop.trf.xlu0
    %v1930 = vpop.trf.xlu0
    %v1931 = vpop.trf.xlu0
    %1932 = vmatprep.subr.bf16.mxu0 %v1837
    %1933 = vmatpush1.bf16.msra.mxu0 %v1836
    %1934 = vmatprep.subr.bf16.mxu0 %v1839
    %1935 = vmatpush1.bf16.msra.mxu0 %v1838
    %1936 = vmatprep.subr.bf16.mxu0 %v1841
    %1937 = vmatpush1.bf16.msra.mxu0 %v1840
    %1938 = vmatprep.subr.bf16.mxu0 %v1843
    %1939 = vmatpush1.bf16.msra.mxu0 %v1842
    %1940 = vmatprep.subr.bf16.mxu0 %v1845
    %1941 = vmatpush1.bf16.msra.mxu0 %v1844
    %1942 = vmatprep.subr.bf16.mxu0 %v1847
    %1943 = vmatpush1.bf16.msra.mxu0 %v1846
    %1944 = vmatprep.subr.bf16.mxu0 %v1849
    %1945 = vmatpush1.bf16.msra.mxu0 %v1848
    %1946 = vmatprep.subr.bf16.mxu0 %v1851
    %1947 = vmatpush1.bf16.msra.mxu0 %v1850
    %1948 = vmatprep.subr.bf16.mxu0 %v1853
    %1949 = vmatpush1.bf16.msra.mxu0 %v1852
    %1950 = vmatprep.subr.bf16.mxu0 %v1855
    %1951 = vmatpush1.bf16.msra.mxu0 %v1854
    %1952 = vmatprep.subr.bf16.mxu0 %v1857
    %1953 = vmatpush1.bf16.msra.mxu0 %v1856
    %1954 = vmatprep.subr.bf16.mxu0 %v1859
    %1955 = vmatpush1.bf16.msra.mxu0 %v1858
    %1956 = vmatprep.subr.bf16.mxu0 %v1861
    %1957 = vmatpush1.bf16.msra.mxu0 %v1860
    %1958 = vmatprep.subr.bf16.mxu0 %v1863
    %1959 = vmatpush1.bf16.msra.mxu0 %v1862
    %1960 = vmatprep.subr.bf16.mxu0 %v1865
    %1961 = vmatpush1.bf16.msra.mxu0 %v1864
    %1962 = vmatprep.subr.bf16.mxu0 %v1867
    %1963 = vmatpush1.bf16.msra.mxu0 %v1866
    %1964 = vmatprep.mubr.bf16.mxu0 %v1908
    %1965 = vmatmul.mubr.bf16.gmra.mrb[0].mxu0 %v1876
    %v1966 = vpop.f32.mrb[0].mxu0
    %v1967 = vadd.f32 0.0, %v1966
    %v1968 = vpop.f32.mrb[0].mxu0
    %v1969 = vadd.f32 0.0, %v1968
    %v1970 = vpop.f32.mrb[0].mxu0
    %v1971 = vadd.f32 0.0, %v1970
    %v1972 = vpop.f32.mrb[0].mxu0
    %v1973 = vadd.f32 0.0, %v1972
    %1974 = vmatprep.mubr.bf16.mxu0 %v1909
    %1975 = vmatmul.mubr.bf16.gmra.mrb[0].mxu0 %v1877
    %v1976 = vpop.f32.mrb[0].mxu0
    %v1977 = vadd.f32 0.0, %v1976
    %v1978 = vpop.f32.mrb[0].mxu0
    %v1979 = vadd.f32 0.0, %v1978
    %v1980 = vpop.f32.mrb[0].mxu0
    %v1981 = vadd.f32 0.0, %v1980
    %v1982 = vpop.f32.mrb[0].mxu0
    %v1983 = vadd.f32 0.0, %v1982
    %1984 = vmatprep.mubr.bf16.mxu0 %v1910
    %1985 = vmatmul.mubr.bf16.gmra.mrb[0].mxu0 %v1878
    %v1986 = vpop.f32.mrb[0].mxu0
    %v1987 = vadd.f32 0.0, %v1986
    %v1988 = vpop.f32.mrb[0].mxu0
    %v1989 = vadd.f32 0.0, %v1988
    %v1990 = vpop.f32.mrb[0].mxu0
    %v1991 = vadd.f32 0.0, %v1990
    %v1992 = vpop.f32.mrb[0].mxu0
    %v1993 = vadd.f32 0.0, %v1992
    %1994 = vmatprep.mubr.bf16.mxu0 %v1911
    %1995 = vmatmul.mubr.bf16.gmra.mrb[0].mxu0 %v1879
    %v1996 = vpop.f32.mrb[0].mxu0
    %v1997 = vadd.f32 0.0, %v1996
    %v1998 = vpop.f32.mrb[0].mxu0
    %v1999 = vadd.f32 0.0, %v1998
    %v2000 = vpop.f32.mrb[0].mxu0
    %v2001 = vadd.f32 0.0, %v2000
    %v2002 = vpop.f32.mrb[0].mxu0
    %v2003 = vadd.f32 0.0, %v2002
    %2004 = vmatprep.mubr.bf16.mxu0 %v1912
    %2005 = vmatmul.mubr.bf16.gmra.mrb[0].mxu0 %v1880
    %v2006 = vpop.f32.mrb[0].mxu0
    %v2007 = vadd.f32 0.0, %v2006
    %v2008 = vpop.f32.mrb[0].mxu0
    %v2009 = vadd.f32 0.0, %v2008
    %v2010 = vpop.f32.mrb[0].mxu0
    %v2011 = vadd.f32 0.0, %v2010
    %v2012 = vpop.f32.mrb[0].mxu0
    %v2013 = vadd.f32 0.0, %v2012
    %2014 = vmatprep.mubr.bf16.mxu0 %v1913
    %2015 = vmatmul.mubr.bf16.gmra.mrb[0].mxu0 %v1881
    %v2016 = vpop.f32.mrb[0].mxu0
    %v2017 = vadd.f32 0.0, %v2016
    %v2018 = vpop.f32.mrb[0].mxu0
    %v2019 = vadd.f32 0.0, %v2018
    %v2020 = vpop.f32.mrb[0].mxu0
    %v2021 = vadd.f32 0.0, %v2020
    %v2022 = vpop.f32.mrb[0].mxu0
    %v2023 = vadd.f32 0.0, %v2022
    %2024 = vmatprep.mubr.bf16.mxu0 %v1914
    %2025 = vmatmul.mubr.bf16.gmra.mrb[0].mxu0 %v1882
    %v2026 = vpop.f32.mrb[0].mxu0
    %v2027 = vadd.f32 0.0, %v2026
    %v2028 = vpop.f32.mrb[0].mxu0
    %v2029 = vadd.f32 0.0, %v2028
    %v2030 = vpop.f32.mrb[0].mxu0
    %v2031 = vadd.f32 0.0, %v2030
    %v2032 = vpop.f32.mrb[0].mxu0
    %v2033 = vadd.f32 0.0, %v2032
    %2034 = vmatprep.mubr.bf16.mxu0 %v1915
    %2035 = vmatmul.mubr.bf16.gmra.mrb[0].mxu0 %v1883
    %v2036 = vpop.f32.mrb[0].mxu0
    %v2037 = vadd.f32 0.0, %v2036
    %v2038 = vpop.f32.mrb[0].mxu0
    %v2039 = vadd.f32 0.0, %v2038
    %v2040 = vpop.f32.mrb[0].mxu0
    %v2041 = vadd.f32 0.0, %v2040
    %v2042 = vpop.f32.mrb[0].mxu0
    %v2043 = vadd.f32 0.0, %v2042
    %2044 = vmatprep.mubr.bf16.mxu0 %v1924
    %2045 = vmatmul.mubr.bf16.gmra.mrb[0].mxu0 %v1892
    %v2046 = vpop.f32.mrb[0].mxu0
    %v2047 = vadd.f32 0.0, %v2046
    %v2048 = vpop.f32.mrb[0].mxu0
    %v2049 = vadd.f32 0.0, %v2048
    %v2050 = vpop.f32.mrb[0].mxu0
    %v2051 = vadd.f32 0.0, %v2050
    %v2052 = vpop.f32.mrb[0].mxu0
    %v2053 = vadd.f32 0.0, %v2052
    %2054 = vmatprep.mubr.bf16.mxu0 %v1925
    %2055 = vmatmul.mubr.bf16.gmra.mrb[0].mxu0 %v1893
    %v2056 = vpop.f32.mrb[0].mxu0
    %v2057 = vadd.f32 0.0, %v2056
    %v2058 = vpop.f32.mrb[0].mxu0
    %v2059 = vadd.f32 0.0, %v2058
    %v2060 = vpop.f32.mrb[0].mxu0
    %v2061 = vadd.f32 0.0, %v2060
    %v2062 = vpop.f32.mrb[0].mxu0
    %v2063 = vadd.f32 0.0, %v2062
    %2064 = vmatprep.mubr.bf16.mxu0 %v1926
    %2065 = vmatmul.mubr.bf16.gmra.mrb[0].mxu0 %v1894
    %v2066 = vpop.f32.mrb[0].mxu0
    %v2067 = vadd.f32 0.0, %v2066
    %v2068 = vpop.f32.mrb[0].mxu0
    %v2069 = vadd.f32 0.0, %v2068
    %v2070 = vpop.f32.mrb[0].mxu0
    %v2071 = vadd.f32 0.0, %v2070
    %v2072 = vpop.f32.mrb[0].mxu0
    %v2073 = vadd.f32 0.0, %v2072
    %2074 = vmatprep.mubr.bf16.mxu0 %v1927
    %2075 = vmatmul.mubr.bf16.gmra.mrb[0].mxu0 %v1895
    %v2076 = vpop.f32.mrb[0].mxu0
    %v2077 = vadd.f32 0.0, %v2076
    %v2078 = vpop.f32.mrb[0].mxu0
    %v2079 = vadd.f32 0.0, %v2078
    %v2080 = vpop.f32.mrb[0].mxu0
    %v2081 = vadd.f32 0.0, %v2080
    %v2082 = vpop.f32.mrb[0].mxu0
    %v2083 = vadd.f32 0.0, %v2082
    %2084 = vmatprep.mubr.bf16.mxu0 %v1928
    %2085 = vmatmul.mubr.bf16.gmra.mrb[0].mxu0 %v1896
    %v2086 = vpop.f32.mrb[0].mxu0
    %v2087 = vadd.f32 0.0, %v2086
    %v2088 = vpop.f32.mrb[0].mxu0
    %v2089 = vadd.f32 0.0, %v2088
    %v2090 = vpop.f32.mrb[0].mxu0
    %v2091 = vadd.f32 0.0, %v2090
    %v2092 = vpop.f32.mrb[0].mxu0
    %v2093 = vadd.f32 0.0, %v2092
    %2094 = vmatprep.mubr.bf16.mxu0 %v1929
    %2095 = vmatmul.mubr.bf16.gmra.mrb[0].mxu0 %v1897
    %v2096 = vpop.f32.mrb[0].mxu0
    %v2097 = vadd.f32 0.0, %v2096
    %v2098 = vpop.f32.mrb[0].mxu0
    %v2099 = vadd.f32 0.0, %v2098
    %v2100 = vpop.f32.mrb[0].mxu0
    %v2101 = vadd.f32 0.0, %v2100
    %v2102 = vpop.f32.mrb[0].mxu0
    %v2103 = vadd.f32 0.0, %v2102
    %2104 = vmatprep.mubr.bf16.mxu0 %v1930
    %2105 = vmatmul.mubr.bf16.gmra.mrb[0].mxu0 %v1898
    %v2106 = vpop.f32.mrb[0].mxu0
    %v2107 = vadd.f32 0.0, %v2106
    %v2108 = vpop.f32.mrb[0].mxu0
    %v2109 = vadd.f32 0.0, %v2108
    %v2110 = vpop.f32.mrb[0].mxu0
    %v2111 = vadd.f32 0.0, %v2110
    %v2112 = vpop.f32.mrb[0].mxu0
    %v2113 = vadd.f32 0.0, %v2112
    %2114 = vmatprep.mubr.bf16.mxu0 %v1931
    %2115 = vmatmul.mubr.bf16.gmra.mrb[0].mxu0 %v1899
    %v2116 = vpop.f32.mrb[0].mxu0
    %v2117 = vadd.f32 0.0, %v2116
    %v2118 = vpop.f32.mrb[0].mxu0
    %v2119 = vadd.f32 0.0, %v2118
    %v2120 = vpop.f32.mrb[0].mxu0
    %v2121 = vadd.f32 0.0, %v2120
    %v2122 = vpop.f32.mrb[0].mxu0
    %v2123 = vadd.f32 0.0, %v2122
    %2124 = vdwg.mxu0
    %v2125 = vmul.f32 %v1967, 0.00390625
    %v2126 = vmul.f32 %v1969, 0.00390625
    %v2127 = vmul.f32 %v1971, 0.00390625
    %v2128 = vmul.f32 %v1973, 0.00390625
    %v2129 = vmul.f32 %v1977, 0.00390625
    %v2130 = vmul.f32 %v1979, 0.00390625
    %v2131 = vmul.f32 %v1981, 0.00390625
    %v2132 = vmul.f32 %v1983, 0.00390625
    %v2133 = vmul.f32 %v1987, 0.00390625
    %v2134 = vmul.f32 %v1989, 0.00390625
    %v2135 = vmul.f32 %v1991, 0.00390625
    %v2136 = vmul.f32 %v1993, 0.00390625
    %v2137 = vmul.f32 %v1997, 0.00390625
    %v2138 = vmul.f32 %v1999, 0.00390625
    %v2139 = vmul.f32 %v2001, 0.00390625
    %v2140 = vmul.f32 %v2003, 0.00390625
    %v2141 = vmul.f32 %v2007, 0.00390625
    %v2142 = vmul.f32 %v2009, 0.00390625
    %v2143 = vmul.f32 %v2011, 0.00390625
    %v2144 = vmul.f32 %v2013, 0.00390625
    %v2145 = vmul.f32 %v2017, 0.00390625
    %v2146 = vmul.f32 %v2019, 0.00390625
    %v2147 = vmul.f32 %v2021, 0.00390625
    %v2148 = vmul.f32 %v2023, 0.00390625
    %v2149 = vmul.f32 %v2027, 0.00390625
    %v2150 = vmul.f32 %v2029, 0.00390625
    %v2151 = vmul.f32 %v2031, 0.00390625
    %v2152 = vmul.f32 %v2033, 0.00390625
    %v2153 = vmul.f32 %v2037, 0.00390625
    %v2154 = vmul.f32 %v2039, 0.00390625
    %v2155 = vmul.f32 %v2041, 0.00390625
    %v2156 = vmul.f32 %v2043, 0.00390625
    %v2157 = vmul.f32 %v2047, 0.00390625
    %v2158 = vmul.f32 %v2049, 0.00390625
    %v2159 = vmul.f32 %v2051, 0.00390625
    %v2160 = vmul.f32 %v2053, 0.00390625
    %v2161 = vmul.f32 %v2057, 0.00390625
    %v2162 = vmul.f32 %v2059, 0.00390625
    %v2163 = vmul.f32 %v2061, 0.00390625
    %v2164 = vmul.f32 %v2063, 0.00390625
    %v2165 = vmul.f32 %v2067, 0.00390625
    %v2166 = vmul.f32 %v2069, 0.00390625
    %v2167 = vmul.f32 %v2071, 0.00390625
    %v2168 = vmul.f32 %v2073, 0.00390625
    %v2169 = vmul.f32 %v2077, 0.00390625
    %v2170 = vmul.f32 %v2079, 0.00390625
    %v2171 = vmul.f32 %v2081, 0.00390625
    %v2172 = vmul.f32 %v2083, 0.00390625
    %v2173 = vmul.f32 %v2087, 0.00390625
    %v2174 = vmul.f32 %v2089, 0.00390625
    %v2175 = vmul.f32 %v2091, 0.00390625
    %v2176 = vmul.f32 %v2093, 0.00390625
    %v2177 = vmul.f32 %v2097, 0.00390625
    %v2178 = vmul.f32 %v2099, 0.00390625
    %v2179 = vmul.f32 %v2101, 0.00390625
    %v2180 = vmul.f32 %v2103, 0.00390625
    %v2181 = vmul.f32 %v2107, 0.00390625
    %v2182 = vmul.f32 %v2109, 0.00390625
    %v2183 = vmul.f32 %v2111, 0.00390625
    %v2184 = vmul.f32 %v2113, 0.00390625
    %v2185 = vmul.f32 %v2117, 0.00390625
    %v2186 = vmul.f32 %v2119, 0.00390625
    %v2187 = vmul.f32 %v2121, 0.00390625
    %v2188 = vmul.f32 %v2123, 0.00390625
    %2189 = vst [vmem:[#allocation10] sm:$0xff] %v2125
    %2190 = vst [vmem:[#allocation10 + $0x8] sm:$0xff] %v2126
    %2191 = vst [vmem:[#allocation10 + $0x10] sm:$0xff] %v2127
    %2192 = vst [vmem:[#allocation10 + $0x18] sm:$0xff] %v2128
    %2193 = vst [vmem:[#allocation10 + $0x20] sm:$0xff] %v2129
    %2194 = vst [vmem:[#allocation10 + $0x28] sm:$0xff] %v2130
    %2195 = vst [vmem:[#allocation10 + $0x30] sm:$0xff] %v2131
    %2196 = vst [vmem:[#allocation10 + $0x38] sm:$0xff] %v2132
    %2197 = vst [vmem:[#allocation10 + $0x40] sm:$0xff] %v2133
    %2198 = vst [vmem:[#allocation10 + $0x48] sm:$0xff] %v2134
    %2199 = vst [vmem:[#allocation10 + $0x50] sm:$0xff] %v2135
    %2200 = vst [vmem:[#allocation10 + $0x58] sm:$0xff] %v2136
    %2201 = vst [vmem:[#allocation10 + $0x60] sm:$0xff] %v2137
    %2202 = vst [vmem:[#allocation10 + $0x68] sm:$0xff] %v2138
    %2203 = vst [vmem:[#allocation10 + $0x70] sm:$0xff] %v2139
    %2204 = vst [vmem:[#allocation10 + $0x78] sm:$0xff] %v2140
    %2205 = vst [vmem:[#allocation10 + $0x80] sm:$0xff] %v2141
    %2206 = vst [vmem:[#allocation10 + $0x88] sm:$0xff] %v2142
    %2207 = vst [vmem:[#allocation10 + $0x90] sm:$0xff] %v2143
    %2208 = vst [vmem:[#allocation10 + $0x98] sm:$0xff] %v2144
    %2209 = vst [vmem:[#allocation10 + $0xa0] sm:$0xff] %v2145
    %2210 = vst [vmem:[#allocation10 + $0xa8] sm:$0xff] %v2146
    %2211 = vst [vmem:[#allocation10 + $0xb0] sm:$0xff] %v2147
    %2212 = vst [vmem:[#allocation10 + $0xb8] sm:$0xff] %v2148
    %2213 = vst [vmem:[#allocation10 + $0xc0] sm:$0xff] %v2149
    %2214 = vst [vmem:[#allocation10 + $0xc8] sm:$0xff] %v2150
    %2215 = vst [vmem:[#allocation10 + $0xd0] sm:$0xff] %v2151
    %2216 = vst [vmem:[#allocation10 + $0xd8] sm:$0xff] %v2152
    %2217 = vst [vmem:[#allocation10 + $0xe0] sm:$0xff] %v2153
    %2218 = vst [vmem:[#allocation10 + $0xe8] sm:$0xff] %v2154
    %2219 = vst [vmem:[#allocation10 + $0xf0] sm:$0xff] %v2155
    %2220 = vst [vmem:[#allocation10 + $0xf8] sm:$0xff] %v2156
    %2221 = vst [vmem:[#allocation10 + $0x100] sm:$0xff] %v2157
    %2222 = vst [vmem:[#allocation10 + $0x108] sm:$0xff] %v2158
    %2223 = vst [vmem:[#allocation10 + $0x110] sm:$0xff] %v2159
    %2224 = vst [vmem:[#allocation10 + $0x118] sm:$0xff] %v2160
    %2225 = vst [vmem:[#allocation10 + $0x120] sm:$0xff] %v2161
    %2226 = vst [vmem:[#allocation10 + $0x128] sm:$0xff] %v2162
    %2227 = vst [vmem:[#allocation10 + $0x130] sm:$0xff] %v2163
    %2228 = vst [vmem:[#allocation10 + $0x138] sm:$0xff] %v2164
    %2229 = vst [vmem:[#allocation10 + $0x140] sm:$0xff] %v2165
    %2230 = vst [vmem:[#allocation10 + $0x148] sm:$0xff] %v2166
    %2231 = vst [vmem:[#allocation10 + $0x150] sm:$0xff] %v2167
    %2232 = vst [vmem:[#allocation10 + $0x158] sm:$0xff] %v2168
    %2233 = vst [vmem:[#allocation10 + $0x160] sm:$0xff] %v2169
    %2234 = vst [vmem:[#allocation10 + $0x168] sm:$0xff] %v2170
    %2235 = vst [vmem:[#allocation10 + $0x170] sm:$0xff] %v2171
    %2236 = vst [vmem:[#allocation10 + $0x178] sm:$0xff] %v2172
    %2237 = vst [vmem:[#allocation10 + $0x180] sm:$0xff] %v2173
    %2238 = vst [vmem:[#allocation10 + $0x188] sm:$0xff] %v2174
    %2239 = vst [vmem:[#allocation10 + $0x190] sm:$0xff] %v2175
    %2240 = vst [vmem:[#allocation10 + $0x198] sm:$0xff] %v2176
    %2241 = vst [vmem:[#allocation10 + $0x1a0] sm:$0xff] %v2177
    %2242 = vst [vmem:[#allocation10 + $0x1a8] sm:$0xff] %v2178
    %2243 = vst [vmem:[#allocation10 + $0x1b0] sm:$0xff] %v2179
    %2244 = vst [vmem:[#allocation10 + $0x1b8] sm:$0xff] %v2180
    %2245 = vst [vmem:[#allocation10 + $0x1c0] sm:$0xff] %v2181
    %2246 = vst [vmem:[#allocation10 + $0x1c8] sm:$0xff] %v2182
    %2247 = vst [vmem:[#allocation10 + $0x1d0] sm:$0xff] %v2183
    %2248 = vst [vmem:[#allocation10 + $0x1d8] sm:$0xff] %v2184
    %2249 = vst [vmem:[#allocation10 + $0x1e0] sm:$0xff] %v2185
    %2250 = vst [vmem:[#allocation10 + $0x1e8] sm:$0xff] %v2186
    %2251 = vst [vmem:[#allocation10 + $0x1f0] sm:$0xff] %v2187
    %2252 = vst [vmem:[#allocation10 + $0x1f8] sm:$0xff] %v2188
    // Predicated region
    $region18: #{tpu_custom_call.1} parent=1 // pred_check
      _
    $region19: #{tpu_custom_call.1} parent=1 // pred_check_branch
      %2254 = sbr.rel (0) target = $region21
    $region20: #{tpu_custom_call.1} parent=1 // pred_region
      %s2256 = ssub.s32 8192, 8192
      %2257 = vsyncadd [#allocation7], %s2256
      %s2258 = sshll.u32 [#allocation10], 4
      %s2259 = int_to_ptr.vmem [resolvable:$true] %s2258
      %2264 = dma.vmem_to_hbm [thread:$0]  %s2259, 8192, %s4, [#allocation7], 256, 256, 16
    $region21: #{tpu_custom_call.1} parent=1 // pred_fallthru
      _
    // Predicated region
    $region22: #{tpu_custom_call.1} parent=1 // pred_check
      _
    $region23: #{tpu_custom_call.1} parent=1 // pred_check_branch
      %2266 = sbr.rel (0) target = $region25
    $region24: #{tpu_custom_call.1} parent=1 // pred_region
      %2267 = dma.done [#allocation7], 8192
    $region25: #{tpu_custom_call.1} parent=1 // pred_fallthru
      _
    %2268 = vsyncpa [#allocation6], 1
    %2269 = vsyncpa [#allocation9], 1
    %2270 = vsyncpa [#allocation7], 1

</llo_original>
